<compile_context>
chip_gen: v7x
topology: tpu7x:2x2x1
jax: 0.10.0
libtpu: 0.0.40
codegen_flags: <defaults>
</compile_context>

<pallas_src>
import functools

import jax
import jax.numpy as jnp
from jax.experimental import pallas as pl
from jax.experimental.pallas import tpu as pltpu


def _head_kernel(x_ref, w_ref, b_ref, o_ref, *, inv_hw):
    # x_ref: [TB, HW, C] (bf16/f32)  w_ref: [C, KP]  b_ref: [1, KP] f32
    # o_ref: [TB, KP] f32
    # Spatial sum accumulated directly in f32 (no full-tile f32 copy held).
    pooled = jnp.sum(x_ref[...], axis=1, dtype=jnp.float32)          # [TB, C]
    logits = jnp.dot(pooled, w_ref[...].astype(jnp.float32),
                     preferred_element_type=jnp.float32)             # [TB, KP]
    logits = logits * inv_hw + b_ref[...]                            # fold 1/HW
    o_ref[...] = jnp.tanh(logits).astype(o_ref.dtype)


def _ceil_to(x, m):
    return ((x + m - 1) // m) * m


def _vmem_capacity_bytes():
    try:
        return int(pltpu.get_tpu_info().vmem_capacity_bytes)
    except Exception:
        return 64 * 1024 * 1024        # v7x per-TensorCore VMEM (smallest gen)


def _pick_batch_tile(batch, hw, chans, itemsize, act_budget_bytes):
    """Largest batch tile whose double-buffered activation slab fits the
    budget, capped so the grid has >= 2 (preferably even) steps when the
    batch allows it (so both v7x TensorCores stream HBM)."""
    per_row = hw * chans * itemsize
    tb = max(1, act_budget_bytes // (2 * per_row))
    if batch < 16:
        tb = min(tb, batch)
        if tb < batch:                       # partial tiles must be 8-aligned
            tb = max(8, (tb // 8) * 8) if batch > 8 else batch
        return tb
    half = _ceil_to((batch + 1) // 2, 8)     # at most half the batch per step
    tb = min(max(8, (min(tb, batch) // 8) * 8), half)
    # Prefer an even number of grid steps (balanced two-core split, no
    # nearly-empty tail); shrink until that holds or tb hits 8.
    while tb > 8 and pl.cdiv(batch, tb) % 2 != 0:
        tb -= 8
    return tb


def prepare_head_params(weight, bias):
    """Pad the [C, K] weight / [K] bias once (parameter-load time) to a
    lane-dense code axis (multiple of 128)."""
    C, K = weight.shape
    KP = _ceil_to(K, 128)
    w_p = jnp.zeros((C, KP), weight.dtype).at[:, :K].set(weight)
    b_p = jnp.zeros((1, KP), jnp.float32).at[0, :K].set(bias.astype(jnp.float32))
    return w_p, b_p


def baseline_head_forward(x_nhwc, targets, w_padded, b_padded, code_length):
    """GAP + Linear(code_length) + Tanh head of `Baseline`.

    x_nhwc  : [B, H, W, C] backbone feature map (channels-last / TPU native,
              bf16 preferred; the kernel accumulates in f32).
    targets : ignored (matches the reference forward signature).
    w_padded: [C, KP] lane-padded weight.  b_padded: [1, KP] f32 padded bias.
    """
    del targets  # reference forward ignores targets
    B, H, W, C = x_nhwc.shape
    KP = w_padded.shape[1]
    HW = H * W

    # Free reshape (no data movement): [B, H, W, C] -> [B, HW, C].
    x = x_nhwc.reshape(B, HW, C)

    vmem_capacity = _vmem_capacity_bytes()
    # Activation double-buffer budget, generation aware:
    #   64-MiB VMEM (v7x): 16 MiB;  128-MiB VMEM (v5e/v6e): 48 MiB.
    act_budget = (48 * 1024 * 1024 if vmem_capacity >= 128 * 1024 * 1024
                  else 16 * 1024 * 1024)

    TB = _pick_batch_tile(B, HW, C, x.dtype.itemsize, act_budget)
    steps = pl.cdiv(B, TB)
    grid = (steps,)
    n_act_buf = 3 if steps >= 3 else 2       # deeper pipeline on long grids

    vmem_bytes = int(
        n_act_buf * (TB * HW * C * x.dtype.itemsize)   # pipelined activations
        + TB * HW * C * 4                              # headroom: f32 upcast temp
        + 2 * (C * KP * w_padded.dtype.itemsize)       # resident padded weight
        + 2 * (KP * 4)                                 # bias
        + 2 * (TB * KP * 4)                            # output blocks
        + TB * C * 4 + TB * KP * 4                     # pooled + logits temps
        + (2 << 20))                                   # slack
    vmem_bytes = max(16 << 20, min(vmem_bytes, vmem_capacity - (8 << 20)))

    cost = pl.CostEstimate(
        flops=2 * B * C * KP + B * HW * C,
        transcendentals=B * KP,
        bytes_accessed=(B * HW * C * x.dtype.itemsize
                        + C * KP * w_padded.dtype.itemsize
                        + B * KP * 4),
    )

    if n_act_buf > 2:
        x_spec = pl.BlockSpec((TB, HW, C), lambda i: (i, 0, 0),
                              pipeline_mode=pl.Buffered(n_act_buf))
    else:
        x_spec = pl.BlockSpec((TB, HW, C), lambda i: (i, 0, 0))

    out_padded = pl.pallas_call(
        functools.partial(_head_kernel, inv_hw=1.0 / float(HW)),
        out_shape=jax.ShapeDtypeStruct((B, KP), jnp.float32),
        grid=grid,
        in_specs=[
            x_spec,
            pl.BlockSpec((C, KP), lambda i: (0, 0)),    # resident weight
            pl.BlockSpec((1, KP), lambda i: (0, 0)),    # resident bias
        ],
        out_specs=pl.BlockSpec((TB, KP), lambda i: (i, 0)),
        compiler_params=pltpu.CompilerParams(
            dimension_semantics=("parallel",),
            vmem_limit_bytes=vmem_bytes),
        cost_estimate=cost,
    )(x, w_padded, b_padded)

    return out_padded[:, :code_length]


def init_params(key, feat_size=2048, code_length=12):
    # Deterministic init mimicking nn.Linear's default uniform(-1/sqrt(fan_in), +).
    kw, kb = jax.random.split(key)
    bound = 1.0 / jnp.sqrt(float(feat_size))
    weight = jax.random.uniform(kw, (feat_size, code_length),
                                minval=-bound, maxval=bound, dtype=jnp.float32)
    bias = jax.random.uniform(kb, (code_length,),
                              minval=-bound, maxval=bound, dtype=jnp.float32)
    return weight, bias


if __name__ == "__main__":
    key = jax.random.PRNGKey(0)
    k_x, k_t, k_p = jax.random.split(key, 3)

    code_length = 12
    feat_size = 2048          # backbone feature channels (per module __init__)
    B, H, W = 2, 4, 4         # small spatial feature map

    # Backbone feature map in NHWC, fed to the head in bf16 (HBM-bound kernel:
    # halving activation bytes ~halves wall clock; accumulation stays f32).
    x_f32 = jax.random.normal(k_x, (B, H, W, feat_size), dtype=jnp.float32)
    x = x_f32.astype(jnp.bfloat16)
    targets = jax.random.randint(k_t, (B,), 0, 200)   # ignored by forward

    weight, bias = init_params(k_p, feat_size, code_length)
    # Pad once at parameter-load time (not per call); weight in bf16.
    w_p, b_p = prepare_head_params(weight.astype(jnp.bfloat16), bias)

    fwd = jax.jit(baseline_head_forward, static_argnames=("code_length",))
    out = fwd(x, targets, w_p, b_p, code_length=code_length)
    out = jax.block_until_ready(out)

    # Pure-JAX reference on the same bf16 inputs, computed in f32:
    # GAP over spatial dims -> Linear -> tanh.
    xr = x.astype(jnp.float32)
    wr = w_p[:, :code_length].astype(jnp.float32)
    pooled_ref = jnp.mean(xr, axis=(1, 2))            # [B, C]
    ref = jnp.tanh(pooled_ref @ wr + bias)
    assert out.shape == (B, code_length)
    assert jnp.allclose(out, ref, atol=2e-2, rtol=2e-2), \
        float(jnp.max(jnp.abs(out - ref)))

    print("KERNEL_OK")
</pallas_src>

<mosaic_0001>
module attributes {stable_mosaic.version = 11 : i64} {
  func.func @_head_kernel(%arg0: i32, %arg1: memref<2x16x2048xbf16, #tpu.memory_space<vmem>>, %arg2: memref<2048x128xbf16, #tpu.memory_space<vmem>>, %arg3: memref<1x128xf32, #tpu.memory_space<vmem>>, %arg4: memref<2x128xf32, #tpu.memory_space<vmem>>) attributes {dimension_semantics = [#tpu.dimension_semantics<parallel>], iteration_bounds = array<i64: 1>, scalar_prefetch = 0 : i64, scratch_operands = 0 : i64, tpu.core_type = #tpu.core_type<tc>, window_params = [{transform_indices = @transform_0, window_bounds = array<i64: 2, 16, 2048>}, {pipeline_mode = #tpu.pipeline_mode<synchronous>, transform_indices = @transform_1, window_bounds = array<i64: 2048, 128>}, {pipeline_mode = #tpu.pipeline_mode<synchronous>, transform_indices = @transform_2, window_bounds = array<i64: 1, 128>}, {transform_indices = @transform_3, window_bounds = array<i64: 2, 128>}]} {
    %c0 = arith.constant 0 : index
    %c0_0 = arith.constant 0 : index
    %c0_1 = arith.constant 0 : index
    %0 = vector.load %arg1[%c0, %c0_0, %c0_1] : memref<2x16x2048xbf16, #tpu.memory_space<vmem>>, vector<2x16x2048xbf16>
    %1 = arith.extf %0 : vector<2x16x2048xbf16> to vector<2x16x2048xf32>
    %cst = arith.constant dense<0.000000e+00> : vector<2x2048xf32>
    %2 = vector.multi_reduction <add>, %1, %cst [1] : vector<2x16x2048xf32> to vector<2x2048xf32>
    %c0_2 = arith.constant 0 : index
    %c0_3 = arith.constant 0 : index
    %3 = vector.load %arg2[%c0_2, %c0_3] : memref<2048x128xbf16, #tpu.memory_space<vmem>>, vector<2048x128xbf16>
    %4 = arith.extf %3 : vector<2048x128xbf16> to vector<2048x128xf32>
    %cst_4 = arith.constant dense<0.000000e+00> : vector<2x128xf32>
    %5 = tpu.matmul %2, %4, %cst_4 {dimension_numbers = #tpu.dot_dimension_numbers<[1], [0], [0], [1], [0, 0, 1, 1], [], []>} : vector<2x2048xf32>, vector<2048x128xf32>, vector<2x128xf32> -> vector<2x128xf32>
    %cst_5 = arith.constant 6.250000e-02 : f32
    %6 = vector.broadcast %cst_5 : f32 to vector<2x128xf32>
    %7 = arith.mulf %5, %6 : vector<2x128xf32>
    %c0_6 = arith.constant 0 : index
    %c0_7 = arith.constant 0 : index
    %8 = vector.load %arg3[%c0_6, %c0_7] : memref<1x128xf32, #tpu.memory_space<vmem>>, vector<1x128xf32>
    %9 = vector.broadcast %8 : vector<1x128xf32> to vector<2x128xf32>
    %10 = arith.addf %7, %9 : vector<2x128xf32>
    %11 = math.tanh %10 : vector<2x128xf32>
    %c0_8 = arith.constant 0 : index
    %c0_9 = arith.constant 0 : index
    %12 = vector.load %arg4[%c0_8, %c0_9] : memref<2x128xf32, #tpu.memory_space<vmem>>, vector<2x128xf32>
    tpu.vector_store %arg4[%c0_8, %c0_9], %11 {strides = array<i32>} : memref<2x128xf32, #tpu.memory_space<vmem>>, vector<2x128xf32>,
    return
  }
  func.func @transform_0(%arg0: i32) -> (i32, i32, i32) {
    %c0_i32 = arith.constant 0 : i32
    %c0_i32_0 = arith.constant 0 : i32
    %c0_i32_1 = arith.constant 0 : i32
    return %arg0, %c0_i32, %c0_i32_0 : i32, i32, i32
  }
  func.func @transform_1(%arg0: i32) -> (i32, i32) {
    %c0_i32 = arith.constant 0 : i32
    %c0_i32_0 = arith.constant 0 : i32
    %c0_i32_1 = arith.constant 0 : i32
    return %c0_i32, %c0_i32_0 : i32, i32
  }
  func.func @transform_2(%arg0: i32) -> (i32, i32) {
    %c0_i32 = arith.constant 0 : i32
    %c0_i32_0 = arith.constant 0 : i32
    %c0_i32_1 = arith.constant 0 : i32
    return %c0_i32, %c0_i32_0 : i32, i32
  }
  func.func @transform_3(%arg0: i32) -> (i32, i32) {
    %c0_i32 = arith.constant 0 : i32
    %c0_i32_0 = arith.constant 0 : i32
    return %arg0, %c0_i32 : i32, i32
  }
}

</mosaic_0001>

<llo_original>
// kernel: baseline_head_forward.1
$region0: #{baseline_head_forward.1}
  #allocation0 [shape = 'u32[]', space=smem, size = 0x4, offset = 0x4, fixed_abs, tag = 'smem constant byte address 0x4 - core index']
  #allocation1 [shape = 'u32[144,128]{1,0:T(1,128)}', space=vmem, size = 0x12000, scoped, tag = 'internal scratch']
  %s0 = inlined_call_operand.vmem [shape: bf16[2,16,2048], index: 0, kind: input, shape index: {}]
  %s1 = inlined_call_operand.hbm [shape: bf16[2048,128], index: 1, kind: input, shape index: {}]
  %s2 = inlined_call_operand.vmem [shape: f32[1,128], index: 2, kind: input, shape index: {}]
  %s3 = inlined_call_operand.hbm [shape: f32[2,128], index: 3, kind: output, shape index: {}]
  %s4 = sld [smem:[#allocation0]]
  $region26: #{baseline_head_forward.1} parent=0
    _
  %s6 = ssub.s32 1, %s4
  %s7 = scalar_select 0, %s6, %s4
  $region1: #{baseline_head_forward.1} parent=0
    #allocation2 [shape = 'u8[524288]{0}', space=vmem, size = 0x80000, scoped, tag = 'input window, operand 1, single buffered']
    #allocation3 [shape = 's32[1]{0}', space=sflag, size = 0x4, scoped, tag = 'scoped memory for baseline_head_forward.1']
    #allocation4 [shape = 's32[1]{0}', space=sflag, size = 0x4, scoped, tag = 'scoped memory for baseline_head_forward.1']
    #allocation5 [shape = 'u8[1024]{0}', space=vmem, size = 0x400, scoped, tag = 'output window, operand 0, single buffered']
    %8 = vsyncpa [#allocation3], 0
    %9 = vsyncpa [#allocation4], 0
    // Predicated region
    $region2: #{baseline_head_forward.1} parent=1 // pred_check
      _
    $region3: #{baseline_head_forward.1} parent=1 // pred_check_branch
      %11 = sbr.rel (0) target = $region5
    $region4: #{baseline_head_forward.1} parent=1 // pred_region
      _
    $region5: #{baseline_head_forward.1} parent=1 // pred_fallthru
      _
    // Predicated region
    $region6: #{baseline_head_forward.1} parent=1 // pred_check
      _
    $region7: #{baseline_head_forward.1} parent=1 // pred_check_branch
      %13 = sbr.rel (0) target = $region9
    $region8: #{baseline_head_forward.1} parent=1 // pred_region
      %s15 = ssub.s32 16384, 16384
      %16 = vsyncadd [#allocation3], %s15
      %s17 = sshll.u32 [#allocation2], 4
      %s18 = int_to_ptr.vmem [resolvable:$true] %s17
      %23 = dma.hbm_to_vmem [thread:$0]  %s1, 16384, %s18, [#allocation3], 64, 64, 4
    $region9: #{baseline_head_forward.1} parent=1 // pred_fallthru
      _
    // Predicated region
    $region10: #{baseline_head_forward.1} parent=1 // pred_check
      _
    $region11: #{baseline_head_forward.1} parent=1 // pred_check_branch
      %25 = sbr.rel (0) target = $region13
    $region12: #{baseline_head_forward.1} parent=1 // pred_region
      _
    $region13: #{baseline_head_forward.1} parent=1 // pred_fallthru
      _
    // Predicated region
    $region14: #{baseline_head_forward.1} parent=1 // pred_check
      _
    $region15: #{baseline_head_forward.1} parent=1 // pred_check_branch
      %27 = sbr.rel (0) target = $region17
    $region16: #{baseline_head_forward.1} parent=1 // pred_region
      %28 = dma.done [#allocation3], 16384
    $region17: #{baseline_head_forward.1} parent=1 // pred_fallthru
      _
    %v29 = vld [vmem:[%s0] sm:$0xff]
    %v30 = vld [vmem:[%s0 + $0x8] sm:$0xff]
    %v31 = vld [vmem:[%s0 + $0x10] sm:$0xff]
    %v32 = vld [vmem:[%s0 + $0x18] sm:$0xff]
    %v33 = vld [vmem:[%s0 + $0x20] sm:$0xff]
    %v34 = vld [vmem:[%s0 + $0x28] sm:$0xff]
    %v35 = vld [vmem:[%s0 + $0x30] sm:$0xff]
    %v36 = vld [vmem:[%s0 + $0x38] sm:$0xff]
    %v37 = vld [vmem:[%s0 + $0x40] sm:$0xff]
    %v38 = vld [vmem:[%s0 + $0x48] sm:$0xff]
    %v39 = vld [vmem:[%s0 + $0x50] sm:$0xff]
    %v40 = vld [vmem:[%s0 + $0x58] sm:$0xff]
    %v41 = vld [vmem:[%s0 + $0x60] sm:$0xff]
    %v42 = vld [vmem:[%s0 + $0x68] sm:$0xff]
    %v43 = vld [vmem:[%s0 + $0x70] sm:$0xff]
    %v44 = vld [vmem:[%s0 + $0x78] sm:$0xff]
    %v45 = vld [vmem:[%s0 + $0x80] sm:$0xff]
    %v46 = vld [vmem:[%s0 + $0x88] sm:$0xff]
    %v47 = vld [vmem:[%s0 + $0x90] sm:$0xff]
    %v48 = vld [vmem:[%s0 + $0x98] sm:$0xff]
    %v49 = vld [vmem:[%s0 + $0xa0] sm:$0xff]
    %v50 = vld [vmem:[%s0 + $0xa8] sm:$0xff]
    %v51 = vld [vmem:[%s0 + $0xb0] sm:$0xff]
    %v52 = vld [vmem:[%s0 + $0xb8] sm:$0xff]
    %v53 = vld [vmem:[%s0 + $0xc0] sm:$0xff]
    %v54 = vld [vmem:[%s0 + $0xc8] sm:$0xff]
    %v55 = vld [vmem:[%s0 + $0xd0] sm:$0xff]
    %v56 = vld [vmem:[%s0 + $0xd8] sm:$0xff]
    %v57 = vld [vmem:[%s0 + $0xe0] sm:$0xff]
    %v58 = vld [vmem:[%s0 + $0xe8] sm:$0xff]
    %v59 = vld [vmem:[%s0 + $0xf0] sm:$0xff]
    %v60 = vld [vmem:[%s0 + $0xf8] sm:$0xff]
    %v61 = vunpack.c.l.bf16 %v29
    %v62 = vunpack.c.h.bf16 %v29
    %v63 = vunpack.c.l.bf16 %v30
    %v64 = vunpack.c.h.bf16 %v30
    %v65 = vunpack.c.l.bf16 %v31
    %v66 = vunpack.c.h.bf16 %v31
    %v67 = vunpack.c.l.bf16 %v32
    %v68 = vunpack.c.h.bf16 %v32
    %v69 = vunpack.c.l.bf16 %v33
    %v70 = vunpack.c.h.bf16 %v33
    %v71 = vunpack.c.l.bf16 %v34
    %v72 = vunpack.c.h.bf16 %v34
    %v73 = vunpack.c.l.bf16 %v35
    %v74 = vunpack.c.h.bf16 %v35
    %v75 = vunpack.c.l.bf16 %v36
    %v76 = vunpack.c.h.bf16 %v36
    %v77 = vunpack.c.l.bf16 %v37
    %v78 = vunpack.c.h.bf16 %v37
    %v79 = vunpack.c.l.bf16 %v38
    %v80 = vunpack.c.h.bf16 %v38
    %v81 = vunpack.c.l.bf16 %v39
    %v82 = vunpack.c.h.bf16 %v39
    %v83 = vunpack.c.l.bf16 %v40
    %v84 = vunpack.c.h.bf16 %v40
    %v85 = vunpack.c.l.bf16 %v41
    %v86 = vunpack.c.h.bf16 %v41
    %v87 = vunpack.c.l.bf16 %v42
    %v88 = vunpack.c.h.bf16 %v42
    %v89 = vunpack.c.l.bf16 %v43
    %v90 = vunpack.c.h.bf16 %v43
    %v91 = vunpack.c.l.bf16 %v44
    %v92 = vunpack.c.h.bf16 %v44
    %v93 = vunpack.c.l.bf16 %v45
    %v94 = vunpack.c.h.bf16 %v45
    %v95 = vunpack.c.l.bf16 %v46
    %v96 = vunpack.c.h.bf16 %v46
    %v97 = vunpack.c.l.bf16 %v47
    %v98 = vunpack.c.h.bf16 %v47
    %v99 = vunpack.c.l.bf16 %v48
    %v100 = vunpack.c.h.bf16 %v48
    %v101 = vunpack.c.l.bf16 %v49
    %v102 = vunpack.c.h.bf16 %v49
    %v103 = vunpack.c.l.bf16 %v50
    %v104 = vunpack.c.h.bf16 %v50
    %v105 = vunpack.c.l.bf16 %v51
    %v106 = vunpack.c.h.bf16 %v51
    %v107 = vunpack.c.l.bf16 %v52
    %v108 = vunpack.c.h.bf16 %v52
    %v109 = vunpack.c.l.bf16 %v53
    %v110 = vunpack.c.h.bf16 %v53
    %v111 = vunpack.c.l.bf16 %v54
    %v112 = vunpack.c.h.bf16 %v54
    %v113 = vunpack.c.l.bf16 %v55
    %v114 = vunpack.c.h.bf16 %v55
    %v115 = vunpack.c.l.bf16 %v56
    %v116 = vunpack.c.h.bf16 %v56
    %v117 = vunpack.c.l.bf16 %v57
    %v118 = vunpack.c.h.bf16 %v57
    %v119 = vunpack.c.l.bf16 %v58
    %v120 = vunpack.c.h.bf16 %v58
    %v121 = vunpack.c.l.bf16 %v59
    %v122 = vunpack.c.h.bf16 %v59
    %v123 = vunpack.c.l.bf16 %v60
    %v124 = vunpack.c.h.bf16 %v60
    %v125 = vadd.f32 %v61, %v77
    %v126 = vrot.slane %v125, 4
    %v127 = vadd.f32 %v125, %v126
    %v128 = vrot.slane %v127, 2
    %v129 = vadd.f32 %v127, %v128
    %v130 = vrot.slane %v129, 1
    %v131 = vadd.f32 %v129, %v130
    %v132 = vadd.f32 %v62, %v78
    %v133 = vrot.slane %v132, 4
    %v134 = vadd.f32 %v132, %v133
    %v135 = vrot.slane %v134, 2
    %v136 = vadd.f32 %v134, %v135
    %v137 = vrot.slane %v136, 1
    %v138 = vadd.f32 %v136, %v137
    %v139 = vadd.f32 %v63, %v79
    %v140 = vrot.slane %v139, 4
    %v141 = vadd.f32 %v139, %v140
    %v142 = vrot.slane %v141, 2
    %v143 = vadd.f32 %v141, %v142
    %v144 = vrot.slane %v143, 1
    %v145 = vadd.f32 %v143, %v144
    %v146 = vadd.f32 %v64, %v80
    %v147 = vrot.slane %v146, 4
    %v148 = vadd.f32 %v146, %v147
    %v149 = vrot.slane %v148, 2
    %v150 = vadd.f32 %v148, %v149
    %v151 = vrot.slane %v150, 1
    %v152 = vadd.f32 %v150, %v151
    %v153 = vadd.f32 %v65, %v81
    %v154 = vrot.slane %v153, 4
    %v155 = vadd.f32 %v153, %v154
    %v156 = vrot.slane %v155, 2
    %v157 = vadd.f32 %v155, %v156
    %v158 = vrot.slane %v157, 1
    %v159 = vadd.f32 %v157, %v158
    %v160 = vadd.f32 %v66, %v82
    %v161 = vrot.slane %v160, 4
    %v162 = vadd.f32 %v160, %v161
    %v163 = vrot.slane %v162, 2
    %v164 = vadd.f32 %v162, %v163
    %v165 = vrot.slane %v164, 1
    %v166 = vadd.f32 %v164, %v165
    %v167 = vadd.f32 %v67, %v83
    %v168 = vrot.slane %v167, 4
    %v169 = vadd.f32 %v167, %v168
    %v170 = vrot.slane %v169, 2
    %v171 = vadd.f32 %v169, %v170
    %v172 = vrot.slane %v171, 1
    %v173 = vadd.f32 %v171, %v172
    %v174 = vadd.f32 %v68, %v84
    %v175 = vrot.slane %v174, 4
    %v176 = vadd.f32 %v174, %v175
    %v177 = vrot.slane %v176, 2
    %v178 = vadd.f32 %v176, %v177
    %v179 = vrot.slane %v178, 1
    %v180 = vadd.f32 %v178, %v179
    %v181 = vadd.f32 %v69, %v85
    %v182 = vrot.slane %v181, 4
    %v183 = vadd.f32 %v181, %v182
    %v184 = vrot.slane %v183, 2
    %v185 = vadd.f32 %v183, %v184
    %v186 = vrot.slane %v185, 1
    %v187 = vadd.f32 %v185, %v186
    %v188 = vadd.f32 %v70, %v86
    %v189 = vrot.slane %v188, 4
    %v190 = vadd.f32 %v188, %v189
    %v191 = vrot.slane %v190, 2
    %v192 = vadd.f32 %v190, %v191
    %v193 = vrot.slane %v192, 1
    %v194 = vadd.f32 %v192, %v193
    %v195 = vadd.f32 %v71, %v87
    %v196 = vrot.slane %v195, 4
    %v197 = vadd.f32 %v195, %v196
    %v198 = vrot.slane %v197, 2
    %v199 = vadd.f32 %v197, %v198
    %v200 = vrot.slane %v199, 1
    %v201 = vadd.f32 %v199, %v200
    %v202 = vadd.f32 %v72, %v88
    %v203 = vrot.slane %v202, 4
    %v204 = vadd.f32 %v202, %v203
    %v205 = vrot.slane %v204, 2
    %v206 = vadd.f32 %v204, %v205
    %v207 = vrot.slane %v206, 1
    %v208 = vadd.f32 %v206, %v207
    %v209 = vadd.f32 %v73, %v89
    %v210 = vrot.slane %v209, 4
    %v211 = vadd.f32 %v209, %v210
    %v212 = vrot.slane %v211, 2
    %v213 = vadd.f32 %v211, %v212
    %v214 = vrot.slane %v213, 1
    %v215 = vadd.f32 %v213, %v214
    %v216 = vadd.f32 %v74, %v90
    %v217 = vrot.slane %v216, 4
    %v218 = vadd.f32 %v216, %v217
    %v219 = vrot.slane %v218, 2
    %v220 = vadd.f32 %v218, %v219
    %v221 = vrot.slane %v220, 1
    %v222 = vadd.f32 %v220, %v221
    %v223 = vadd.f32 %v75, %v91
    %v224 = vrot.slane %v223, 4
    %v225 = vadd.f32 %v223, %v224
    %v226 = vrot.slane %v225, 2
    %v227 = vadd.f32 %v225, %v226
    %v228 = vrot.slane %v227, 1
    %v229 = vadd.f32 %v227, %v228
    %v230 = vadd.f32 %v76, %v92
    %v231 = vrot.slane %v230, 4
    %v232 = vadd.f32 %v230, %v231
    %v233 = vrot.slane %v232, 2
    %v234 = vadd.f32 %v232, %v233
    %v235 = vrot.slane %v234, 1
    %v236 = vadd.f32 %v234, %v235
    %v237 = vadd.f32 %v93, %v109
    %v238 = vrot.slane %v237, 4
    %v239 = vadd.f32 %v237, %v238
    %v240 = vrot.slane %v239, 2
    %v241 = vadd.f32 %v239, %v240
    %v242 = vrot.slane %v241, 1
    %v243 = vadd.f32 %v241, %v242
    %v244 = vadd.f32 %v94, %v110
    %v245 = vrot.slane %v244, 4
    %v246 = vadd.f32 %v244, %v245
    %v247 = vrot.slane %v246, 2
    %v248 = vadd.f32 %v246, %v247
    %v249 = vrot.slane %v248, 1
    %v250 = vadd.f32 %v248, %v249
    %v251 = vadd.f32 %v95, %v111
    %v252 = vrot.slane %v251, 4
    %v253 = vadd.f32 %v251, %v252
    %v254 = vrot.slane %v253, 2
    %v255 = vadd.f32 %v253, %v254
    %v256 = vrot.slane %v255, 1
    %v257 = vadd.f32 %v255, %v256
    %v258 = vadd.f32 %v96, %v112
    %v259 = vrot.slane %v258, 4
    %v260 = vadd.f32 %v258, %v259
    %v261 = vrot.slane %v260, 2
    %v262 = vadd.f32 %v260, %v261
    %v263 = vrot.slane %v262, 1
    %v264 = vadd.f32 %v262, %v263
    %v265 = vadd.f32 %v97, %v113
    %v266 = vrot.slane %v265, 4
    %v267 = vadd.f32 %v265, %v266
    %v268 = vrot.slane %v267, 2
    %v269 = vadd.f32 %v267, %v268
    %v270 = vrot.slane %v269, 1
    %v271 = vadd.f32 %v269, %v270
    %v272 = vadd.f32 %v98, %v114
    %v273 = vrot.slane %v272, 4
    %v274 = vadd.f32 %v272, %v273
    %v275 = vrot.slane %v274, 2
    %v276 = vadd.f32 %v274, %v275
    %v277 = vrot.slane %v276, 1
    %v278 = vadd.f32 %v276, %v277
    %v279 = vadd.f32 %v99, %v115
    %v280 = vrot.slane %v279, 4
    %v281 = vadd.f32 %v279, %v280
    %v282 = vrot.slane %v281, 2
    %v283 = vadd.f32 %v281, %v282
    %v284 = vrot.slane %v283, 1
    %v285 = vadd.f32 %v283, %v284
    %v286 = vadd.f32 %v100, %v116
    %v287 = vrot.slane %v286, 4
    %v288 = vadd.f32 %v286, %v287
    %v289 = vrot.slane %v288, 2
    %v290 = vadd.f32 %v288, %v289
    %v291 = vrot.slane %v290, 1
    %v292 = vadd.f32 %v290, %v291
    %v293 = vadd.f32 %v101, %v117
    %v294 = vrot.slane %v293, 4
    %v295 = vadd.f32 %v293, %v294
    %v296 = vrot.slane %v295, 2
    %v297 = vadd.f32 %v295, %v296
    %v298 = vrot.slane %v297, 1
    %v299 = vadd.f32 %v297, %v298
    %v300 = vadd.f32 %v102, %v118
    %v301 = vrot.slane %v300, 4
    %v302 = vadd.f32 %v300, %v301
    %v303 = vrot.slane %v302, 2
    %v304 = vadd.f32 %v302, %v303
    %v305 = vrot.slane %v304, 1
    %v306 = vadd.f32 %v304, %v305
    %v307 = vadd.f32 %v103, %v119
    %v308 = vrot.slane %v307, 4
    %v309 = vadd.f32 %v307, %v308
    %v310 = vrot.slane %v309, 2
    %v311 = vadd.f32 %v309, %v310
    %v312 = vrot.slane %v311, 1
    %v313 = vadd.f32 %v311, %v312
    %v314 = vadd.f32 %v104, %v120
    %v315 = vrot.slane %v314, 4
    %v316 = vadd.f32 %v314, %v315
    %v317 = vrot.slane %v316, 2
    %v318 = vadd.f32 %v316, %v317
    %v319 = vrot.slane %v318, 1
    %v320 = vadd.f32 %v318, %v319
    %v321 = vadd.f32 %v105, %v121
    %v322 = vrot.slane %v321, 4
    %v323 = vadd.f32 %v321, %v322
    %v324 = vrot.slane %v323, 2
    %v325 = vadd.f32 %v323, %v324
    %v326 = vrot.slane %v325, 1
    %v327 = vadd.f32 %v325, %v326
    %v328 = vadd.f32 %v106, %v122
    %v329 = vrot.slane %v328, 4
    %v330 = vadd.f32 %v328, %v329
    %v331 = vrot.slane %v330, 2
    %v332 = vadd.f32 %v330, %v331
    %v333 = vrot.slane %v332, 1
    %v334 = vadd.f32 %v332, %v333
    %v335 = vadd.f32 %v107, %v123
    %v336 = vrot.slane %v335, 4
    %v337 = vadd.f32 %v335, %v336
    %v338 = vrot.slane %v337, 2
    %v339 = vadd.f32 %v337, %v338
    %v340 = vrot.slane %v339, 1
    %v341 = vadd.f32 %v339, %v340
    %v342 = vadd.f32 %v108, %v124
    %v343 = vrot.slane %v342, 4
    %v344 = vadd.f32 %v342, %v343
    %v345 = vrot.slane %v344, 2
    %v346 = vadd.f32 %v344, %v345
    %v347 = vrot.slane %v346, 1
    %v348 = vadd.f32 %v346, %v347
    %v349 = vld [vmem:[#allocation2] sm:$0xf]
    %v350 = vld [vmem:[#allocation2 + $0x4] sm:$0xf]
    %v351 = vld [vmem:[#allocation2 + $0x8] sm:$0xf]
    %v352 = vld [vmem:[#allocation2 + $0xc] sm:$0xf]
    %v353 = vld [vmem:[#allocation2 + $0x10] sm:$0xf]
    %v354 = vld [vmem:[#allocation2 + $0x14] sm:$0xf]
    %v355 = vld [vmem:[#allocation2 + $0x18] sm:$0xf]
    %v356 = vld [vmem:[#allocation2 + $0x1c] sm:$0xf]
    %v357 = vld [vmem:[#allocation2 + $0x20] sm:$0xf]
    %v358 = vld [vmem:[#allocation2 + $0x24] sm:$0xf]
    %v359 = vld [vmem:[#allocation2 + $0x28] sm:$0xf]
    %v360 = vld [vmem:[#allocation2 + $0x2c] sm:$0xf]
    %v361 = vld [vmem:[#allocation2 + $0x30] sm:$0xf]
    %v362 = vld [vmem:[#allocation2 + $0x34] sm:$0xf]
    %v363 = vld [vmem:[#allocation2 + $0x38] sm:$0xf]
    %v364 = vld [vmem:[#allocation2 + $0x3c] sm:$0xf]
    %v365 = vld [vmem:[#allocation2 + $0x40] sm:$0xf]
    %v366 = vld [vmem:[#allocation2 + $0x44] sm:$0xf]
    %v367 = vld [vmem:[#allocation2 + $0x48] sm:$0xf]
    %v368 = vld [vmem:[#allocation2 + $0x4c] sm:$0xf]
    %v369 = vld [vmem:[#allocation2 + $0x50] sm:$0xf]
    %v370 = vld [vmem:[#allocation2 + $0x54] sm:$0xf]
    %v371 = vld [vmem:[#allocation2 + $0x58] sm:$0xf]
    %v372 = vld [vmem:[#allocation2 + $0x5c] sm:$0xf]
    %v373 = vld [vmem:[#allocation2 + $0x60] sm:$0xf]
    %v374 = vld [vmem:[#allocation2 + $0x64] sm:$0xf]
    %v375 = vld [vmem:[#allocation2 + $0x68] sm:$0xf]
    %v376 = vld [vmem:[#allocation2 + $0x6c] sm:$0xf]
    %v377 = vld [vmem:[#allocation2 + $0x70] sm:$0xf]
    %v378 = vld [vmem:[#allocation2 + $0x74] sm:$0xf]
    %v379 = vld [vmem:[#allocation2 + $0x78] sm:$0xf]
    %v380 = vld [vmem:[#allocation2 + $0x7c] sm:$0xf]
    %v381 = vld [vmem:[#allocation2 + $0x80] sm:$0xf]
    %v382 = vld [vmem:[#allocation2 + $0x84] sm:$0xf]
    %v383 = vld [vmem:[#allocation2 + $0x88] sm:$0xf]
    %v384 = vld [vmem:[#allocation2 + $0x8c] sm:$0xf]
    %v385 = vld [vmem:[#allocation2 + $0x90] sm:$0xf]
    %v386 = vld [vmem:[#allocation2 + $0x94] sm:$0xf]
    %v387 = vld [vmem:[#allocation2 + $0x98] sm:$0xf]
    %v388 = vld [vmem:[#allocation2 + $0x9c] sm:$0xf]
    %v389 = vld [vmem:[#allocation2 + $0xa0] sm:$0xf]
    %v390 = vld [vmem:[#allocation2 + $0xa4] sm:$0xf]
    %v391 = vld [vmem:[#allocation2 + $0xa8] sm:$0xf]
    %v392 = vld [vmem:[#allocation2 + $0xac] sm:$0xf]
    %v393 = vld [vmem:[#allocation2 + $0xb0] sm:$0xf]
    %v394 = vld [vmem:[#allocation2 + $0xb4] sm:$0xf]
    %v395 = vld [vmem:[#allocation2 + $0xb8] sm:$0xf]
    %v396 = vld [vmem:[#allocation2 + $0xbc] sm:$0xf]
    %v397 = vld [vmem:[#allocation2 + $0xc0] sm:$0xf]
    %v398 = vld [vmem:[#allocation2 + $0xc4] sm:$0xf]
    %v399 = vld [vmem:[#allocation2 + $0xc8] sm:$0xf]
    %v400 = vld [vmem:[#allocation2 + $0xcc] sm:$0xf]
    %v401 = vld [vmem:[#allocation2 + $0xd0] sm:$0xf]
    %v402 = vld [vmem:[#allocation2 + $0xd4] sm:$0xf]
    %v403 = vld [vmem:[#allocation2 + $0xd8] sm:$0xf]
    %v404 = vld [vmem:[#allocation2 + $0xdc] sm:$0xf]
    %v405 = vld [vmem:[#allocation2 + $0xe0] sm:$0xf]
    %v406 = vld [vmem:[#allocation2 + $0xe4] sm:$0xf]
    %v407 = vld [vmem:[#allocation2 + $0xe8] sm:$0xf]
    %v408 = vld [vmem:[#allocation2 + $0xec] sm:$0xf]
    %v409 = vld [vmem:[#allocation2 + $0xf0] sm:$0xf]
    %v410 = vld [vmem:[#allocation2 + $0xf4] sm:$0xf]
    %v411 = vld [vmem:[#allocation2 + $0xf8] sm:$0xf]
    %v412 = vld [vmem:[#allocation2 + $0xfc] sm:$0xf]
    %v413 = vld [vmem:[#allocation2 + $0x100] sm:$0xf]
    %v414 = vld [vmem:[#allocation2 + $0x104] sm:$0xf]
    %v415 = vld [vmem:[#allocation2 + $0x108] sm:$0xf]
    %v416 = vld [vmem:[#allocation2 + $0x10c] sm:$0xf]
    %v417 = vld [vmem:[#allocation2 + $0x110] sm:$0xf]
    %v418 = vld [vmem:[#allocation2 + $0x114] sm:$0xf]
    %v419 = vld [vmem:[#allocation2 + $0x118] sm:$0xf]
    %v420 = vld [vmem:[#allocation2 + $0x11c] sm:$0xf]
    %v421 = vld [vmem:[#allocation2 + $0x120] sm:$0xf]
    %v422 = vld [vmem:[#allocation2 + $0x124] sm:$0xf]
    %v423 = vld [vmem:[#allocation2 + $0x128] sm:$0xf]
    %v424 = vld [vmem:[#allocation2 + $0x12c] sm:$0xf]
    %v425 = vld [vmem:[#allocation2 + $0x130] sm:$0xf]
    %v426 = vld [vmem:[#allocation2 + $0x134] sm:$0xf]
    %v427 = vld [vmem:[#allocation2 + $0x138] sm:$0xf]
    %v428 = vld [vmem:[#allocation2 + $0x13c] sm:$0xf]
    %v429 = vld [vmem:[#allocation2 + $0x140] sm:$0xf]
    %v430 = vld [vmem:[#allocation2 + $0x144] sm:$0xf]
    %v431 = vld [vmem:[#allocation2 + $0x148] sm:$0xf]
    %v432 = vld [vmem:[#allocation2 + $0x14c] sm:$0xf]
    %v433 = vld [vmem:[#allocation2 + $0x150] sm:$0xf]
    %v434 = vld [vmem:[#allocation2 + $0x154] sm:$0xf]
    %v435 = vld [vmem:[#allocation2 + $0x158] sm:$0xf]
    %v436 = vld [vmem:[#allocation2 + $0x15c] sm:$0xf]
    %v437 = vld [vmem:[#allocation2 + $0x160] sm:$0xf]
    %v438 = vld [vmem:[#allocation2 + $0x164] sm:$0xf]
    %v439 = vld [vmem:[#allocation2 + $0x168] sm:$0xf]
    %v440 = vld [vmem:[#allocation2 + $0x16c] sm:$0xf]
    %v441 = vld [vmem:[#allocation2 + $0x170] sm:$0xf]
    %v442 = vld [vmem:[#allocation2 + $0x174] sm:$0xf]
    %v443 = vld [vmem:[#allocation2 + $0x178] sm:$0xf]
    %v444 = vld [vmem:[#allocation2 + $0x17c] sm:$0xf]
    %v445 = vld [vmem:[#allocation2 + $0x180] sm:$0xf]
    %v446 = vld [vmem:[#allocation2 + $0x184] sm:$0xf]
    %v447 = vld [vmem:[#allocation2 + $0x188] sm:$0xf]
    %v448 = vld [vmem:[#allocation2 + $0x18c] sm:$0xf]
    %v449 = vld [vmem:[#allocation2 + $0x190] sm:$0xf]
    %v450 = vld [vmem:[#allocation2 + $0x194] sm:$0xf]
    %v451 = vld [vmem:[#allocation2 + $0x198] sm:$0xf]
    %v452 = vld [vmem:[#allocation2 + $0x19c] sm:$0xf]
    %v453 = vld [vmem:[#allocation2 + $0x1a0] sm:$0xf]
    %v454 = vld [vmem:[#allocation2 + $0x1a4] sm:$0xf]
    %v455 = vld [vmem:[#allocation2 + $0x1a8] sm:$0xf]
    %v456 = vld [vmem:[#allocation2 + $0x1ac] sm:$0xf]
    %v457 = vld [vmem:[#allocation2 + $0x1b0] sm:$0xf]
    %v458 = vld [vmem:[#allocation2 + $0x1b4] sm:$0xf]
    %v459 = vld [vmem:[#allocation2 + $0x1b8] sm:$0xf]
    %v460 = vld [vmem:[#allocation2 + $0x1bc] sm:$0xf]
    %v461 = vld [vmem:[#allocation2 + $0x1c0] sm:$0xf]
    %v462 = vld [vmem:[#allocation2 + $0x1c4] sm:$0xf]
    %v463 = vld [vmem:[#allocation2 + $0x1c8] sm:$0xf]
    %v464 = vld [vmem:[#allocation2 + $0x1cc] sm:$0xf]
    %v465 = vld [vmem:[#allocation2 + $0x1d0] sm:$0xf]
    %v466 = vld [vmem:[#allocation2 + $0x1d4] sm:$0xf]
    %v467 = vld [vmem:[#allocation2 + $0x1d8] sm:$0xf]
    %v468 = vld [vmem:[#allocation2 + $0x1dc] sm:$0xf]
    %v469 = vld [vmem:[#allocation2 + $0x1e0] sm:$0xf]
    %v470 = vld [vmem:[#allocation2 + $0x1e4] sm:$0xf]
    %v471 = vld [vmem:[#allocation2 + $0x1e8] sm:$0xf]
    %v472 = vld [vmem:[#allocation2 + $0x1ec] sm:$0xf]
    %v473 = vld [vmem:[#allocation2 + $0x1f0] sm:$0xf]
    %v474 = vld [vmem:[#allocation2 + $0x1f4] sm:$0xf]
    %v475 = vld [vmem:[#allocation2 + $0x1f8] sm:$0xf]
    %v476 = vld [vmem:[#allocation2 + $0x1fc] sm:$0xf]
    %v477 = vld [vmem:[#allocation2 + $0x200] sm:$0xf]
    %v478 = vld [vmem:[#allocation2 + $0x204] sm:$0xf]
    %v479 = vld [vmem:[#allocation2 + $0x208] sm:$0xf]
    %v480 = vld [vmem:[#allocation2 + $0x20c] sm:$0xf]
    %v481 = vld [vmem:[#allocation2 + $0x210] sm:$0xf]
    %v482 = vld [vmem:[#allocation2 + $0x214] sm:$0xf]
    %v483 = vld [vmem:[#allocation2 + $0x218] sm:$0xf]
    %v484 = vld [vmem:[#allocation2 + $0x21c] sm:$0xf]
    %v485 = vld [vmem:[#allocation2 + $0x220] sm:$0xf]
    %v486 = vld [vmem:[#allocation2 + $0x224] sm:$0xf]
    %v487 = vld [vmem:[#allocation2 + $0x228] sm:$0xf]
    %v488 = vld [vmem:[#allocation2 + $0x22c] sm:$0xf]
    %v489 = vld [vmem:[#allocation2 + $0x230] sm:$0xf]
    %v490 = vld [vmem:[#allocation2 + $0x234] sm:$0xf]
    %v491 = vld [vmem:[#allocation2 + $0x238] sm:$0xf]
    %v492 = vld [vmem:[#allocation2 + $0x23c] sm:$0xf]
    %v493 = vld [vmem:[#allocation2 + $0x240] sm:$0xf]
    %v494 = vld [vmem:[#allocation2 + $0x244] sm:$0xf]
    %v495 = vld [vmem:[#allocation2 + $0x248] sm:$0xf]
    %v496 = vld [vmem:[#allocation2 + $0x24c] sm:$0xf]
    %v497 = vld [vmem:[#allocation2 + $0x250] sm:$0xf]
    %v498 = vld [vmem:[#allocation2 + $0x254] sm:$0xf]
    %v499 = vld [vmem:[#allocation2 + $0x258] sm:$0xf]
    %v500 = vld [vmem:[#allocation2 + $0x25c] sm:$0xf]
    %v501 = vld [vmem:[#allocation2 + $0x260] sm:$0xf]
    %v502 = vld [vmem:[#allocation2 + $0x264] sm:$0xf]
    %v503 = vld [vmem:[#allocation2 + $0x268] sm:$0xf]
    %v504 = vld [vmem:[#allocation2 + $0x26c] sm:$0xf]
    %v505 = vld [vmem:[#allocation2 + $0x270] sm:$0xf]
    %v506 = vld [vmem:[#allocation2 + $0x274] sm:$0xf]
    %v507 = vld [vmem:[#allocation2 + $0x278] sm:$0xf]
    %v508 = vld [vmem:[#allocation2 + $0x27c] sm:$0xf]
    %v509 = vld [vmem:[#allocation2 + $0x280] sm:$0xf]
    %v510 = vld [vmem:[#allocation2 + $0x284] sm:$0xf]
    %v511 = vld [vmem:[#allocation2 + $0x288] sm:$0xf]
    %v512 = vld [vmem:[#allocation2 + $0x28c] sm:$0xf]
    %v513 = vld [vmem:[#allocation2 + $0x290] sm:$0xf]
    %v514 = vld [vmem:[#allocation2 + $0x294] sm:$0xf]
    %v515 = vld [vmem:[#allocation2 + $0x298] sm:$0xf]
    %v516 = vld [vmem:[#allocation2 + $0x29c] sm:$0xf]
    %v517 = vld [vmem:[#allocation2 + $0x2a0] sm:$0xf]
    %v518 = vld [vmem:[#allocation2 + $0x2a4] sm:$0xf]
    %v519 = vld [vmem:[#allocation2 + $0x2a8] sm:$0xf]
    %v520 = vld [vmem:[#allocation2 + $0x2ac] sm:$0xf]
    %v521 = vld [vmem:[#allocation2 + $0x2b0] sm:$0xf]
    %v522 = vld [vmem:[#allocation2 + $0x2b4] sm:$0xf]
    %v523 = vld [vmem:[#allocation2 + $0x2b8] sm:$0xf]
    %v524 = vld [vmem:[#allocation2 + $0x2bc] sm:$0xf]
    %v525 = vld [vmem:[#allocation2 + $0x2c0] sm:$0xf]
    %v526 = vld [vmem:[#allocation2 + $0x2c4] sm:$0xf]
    %v527 = vld [vmem:[#allocation2 + $0x2c8] sm:$0xf]
    %v528 = vld [vmem:[#allocation2 + $0x2cc] sm:$0xf]
    %v529 = vld [vmem:[#allocation2 + $0x2d0] sm:$0xf]
    %v530 = vld [vmem:[#allocation2 + $0x2d4] sm:$0xf]
    %v531 = vld [vmem:[#allocation2 + $0x2d8] sm:$0xf]
    %v532 = vld [vmem:[#allocation2 + $0x2dc] sm:$0xf]
    %v533 = vld [vmem:[#allocation2 + $0x2e0] sm:$0xf]
    %v534 = vld [vmem:[#allocation2 + $0x2e4] sm:$0xf]
    %v535 = vld [vmem:[#allocation2 + $0x2e8] sm:$0xf]
    %v536 = vld [vmem:[#allocation2 + $0x2ec] sm:$0xf]
    %v537 = vld [vmem:[#allocation2 + $0x2f0] sm:$0xf]
    %v538 = vld [vmem:[#allocation2 + $0x2f4] sm:$0xf]
    %v539 = vld [vmem:[#allocation2 + $0x2f8] sm:$0xf]
    %v540 = vld [vmem:[#allocation2 + $0x2fc] sm:$0xf]
    %v541 = vld [vmem:[#allocation2 + $0x300] sm:$0xf]
    %v542 = vld [vmem:[#allocation2 + $0x304] sm:$0xf]
    %v543 = vld [vmem:[#allocation2 + $0x308] sm:$0xf]
    %v544 = vld [vmem:[#allocation2 + $0x30c] sm:$0xf]
    %v545 = vld [vmem:[#allocation2 + $0x310] sm:$0xf]
    %v546 = vld [vmem:[#allocation2 + $0x314] sm:$0xf]
    %v547 = vld [vmem:[#allocation2 + $0x318] sm:$0xf]
    %v548 = vld [vmem:[#allocation2 + $0x31c] sm:$0xf]
    %v549 = vld [vmem:[#allocation2 + $0x320] sm:$0xf]
    %v550 = vld [vmem:[#allocation2 + $0x324] sm:$0xf]
    %v551 = vld [vmem:[#allocation2 + $0x328] sm:$0xf]
    %v552 = vld [vmem:[#allocation2 + $0x32c] sm:$0xf]
    %v553 = vld [vmem:[#allocation2 + $0x330] sm:$0xf]
    %v554 = vld [vmem:[#allocation2 + $0x334] sm:$0xf]
    %v555 = vld [vmem:[#allocation2 + $0x338] sm:$0xf]
    %v556 = vld [vmem:[#allocation2 + $0x33c] sm:$0xf]
    %v557 = vld [vmem:[#allocation2 + $0x340] sm:$0xf]
    %v558 = vld [vmem:[#allocation2 + $0x344] sm:$0xf]
    %v559 = vld [vmem:[#allocation2 + $0x348] sm:$0xf]
    %v560 = vld [vmem:[#allocation2 + $0x34c] sm:$0xf]
    %v561 = vld [vmem:[#allocation2 + $0x350] sm:$0xf]
    %v562 = vld [vmem:[#allocation2 + $0x354] sm:$0xf]
    %v563 = vld [vmem:[#allocation2 + $0x358] sm:$0xf]
    %v564 = vld [vmem:[#allocation2 + $0x35c] sm:$0xf]
    %v565 = vld [vmem:[#allocation2 + $0x360] sm:$0xf]
    %v566 = vld [vmem:[#allocation2 + $0x364] sm:$0xf]
    %v567 = vld [vmem:[#allocation2 + $0x368] sm:$0xf]
    %v568 = vld [vmem:[#allocation2 + $0x36c] sm:$0xf]
    %v569 = vld [vmem:[#allocation2 + $0x370] sm:$0xf]
    %v570 = vld [vmem:[#allocation2 + $0x374] sm:$0xf]
    %v571 = vld [vmem:[#allocation2 + $0x378] sm:$0xf]
    %v572 = vld [vmem:[#allocation2 + $0x37c] sm:$0xf]
    %v573 = vld [vmem:[#allocation2 + $0x380] sm:$0xf]
    %v574 = vld [vmem:[#allocation2 + $0x384] sm:$0xf]
    %v575 = vld [vmem:[#allocation2 + $0x388] sm:$0xf]
    %v576 = vld [vmem:[#allocation2 + $0x38c] sm:$0xf]
    %v577 = vld [vmem:[#allocation2 + $0x390] sm:$0xf]
    %v578 = vld [vmem:[#allocation2 + $0x394] sm:$0xf]
    %v579 = vld [vmem:[#allocation2 + $0x398] sm:$0xf]
    %v580 = vld [vmem:[#allocation2 + $0x39c] sm:$0xf]
    %v581 = vld [vmem:[#allocation2 + $0x3a0] sm:$0xf]
    %v582 = vld [vmem:[#allocation2 + $0x3a4] sm:$0xf]
    %v583 = vld [vmem:[#allocation2 + $0x3a8] sm:$0xf]
    %v584 = vld [vmem:[#allocation2 + $0x3ac] sm:$0xf]
    %v585 = vld [vmem:[#allocation2 + $0x3b0] sm:$0xf]
    %v586 = vld [vmem:[#allocation2 + $0x3b4] sm:$0xf]
    %v587 = vld [vmem:[#allocation2 + $0x3b8] sm:$0xf]
    %v588 = vld [vmem:[#allocation2 + $0x3bc] sm:$0xf]
    %v589 = vld [vmem:[#allocation2 + $0x3c0] sm:$0xf]
    %v590 = vld [vmem:[#allocation2 + $0x3c4] sm:$0xf]
    %v591 = vld [vmem:[#allocation2 + $0x3c8] sm:$0xf]
    %v592 = vld [vmem:[#allocation2 + $0x3cc] sm:$0xf]
    %v593 = vld [vmem:[#allocation2 + $0x3d0] sm:$0xf]
    %v594 = vld [vmem:[#allocation2 + $0x3d4] sm:$0xf]
    %v595 = vld [vmem:[#allocation2 + $0x3d8] sm:$0xf]
    %v596 = vld [vmem:[#allocation2 + $0x3dc] sm:$0xf]
    %v597 = vld [vmem:[#allocation2 + $0x3e0] sm:$0xf]
    %v598 = vld [vmem:[#allocation2 + $0x3e4] sm:$0xf]
    %v599 = vld [vmem:[#allocation2 + $0x3e8] sm:$0xf]
    %v600 = vld [vmem:[#allocation2 + $0x3ec] sm:$0xf]
    %v601 = vld [vmem:[#allocation2 + $0x3f0] sm:$0xf]
    %v602 = vld [vmem:[#allocation2 + $0x3f4] sm:$0xf]
    %v603 = vld [vmem:[#allocation2 + $0x3f8] sm:$0xf]
    %v604 = vld [vmem:[#allocation2 + $0x3fc] sm:$0xf]
    %v605 = vunpack.c.l.bf16 %v349
    %v606 = vunpack.c.l.bf16 %v350
    %v607 = vunpack.c.l.bf16 %v351
    %v608 = vunpack.c.l.bf16 %v352
    %v609 = vunpack.c.l.bf16 %v353
    %v610 = vunpack.c.l.bf16 %v354
    %v611 = vunpack.c.l.bf16 %v355
    %v612 = vunpack.c.l.bf16 %v356
    %v613 = vunpack.c.l.bf16 %v357
    %v614 = vunpack.c.l.bf16 %v358
    %v615 = vunpack.c.l.bf16 %v359
    %v616 = vunpack.c.l.bf16 %v360
    %v617 = vunpack.c.l.bf16 %v361
    %v618 = vunpack.c.l.bf16 %v362
    %v619 = vunpack.c.l.bf16 %v363
    %v620 = vunpack.c.l.bf16 %v364
    %v621 = vunpack.c.l.bf16 %v365
    %v622 = vunpack.c.l.bf16 %v366
    %v623 = vunpack.c.l.bf16 %v367
    %v624 = vunpack.c.l.bf16 %v368
    %v625 = vunpack.c.l.bf16 %v369
    %v626 = vunpack.c.l.bf16 %v370
    %v627 = vunpack.c.l.bf16 %v371
    %v628 = vunpack.c.l.bf16 %v372
    %v629 = vunpack.c.l.bf16 %v373
    %v630 = vunpack.c.l.bf16 %v374
    %v631 = vunpack.c.l.bf16 %v375
    %v632 = vunpack.c.l.bf16 %v376
    %v633 = vunpack.c.l.bf16 %v377
    %v634 = vunpack.c.l.bf16 %v378
    %v635 = vunpack.c.l.bf16 %v379
    %v636 = vunpack.c.l.bf16 %v380
    %v637 = vunpack.c.l.bf16 %v381
    %v638 = vunpack.c.l.bf16 %v382
    %v639 = vunpack.c.l.bf16 %v383
    %v640 = vunpack.c.l.bf16 %v384
    %v641 = vunpack.c.l.bf16 %v385
    %v642 = vunpack.c.l.bf16 %v386
    %v643 = vunpack.c.l.bf16 %v387
    %v644 = vunpack.c.l.bf16 %v388
    %v645 = vunpack.c.l.bf16 %v389
    %v646 = vunpack.c.l.bf16 %v390
    %v647 = vunpack.c.l.bf16 %v391
    %v648 = vunpack.c.l.bf16 %v392
    %v649 = vunpack.c.l.bf16 %v393
    %v650 = vunpack.c.l.bf16 %v394
    %v651 = vunpack.c.l.bf16 %v395
    %v652 = vunpack.c.l.bf16 %v396
    %v653 = vunpack.c.l.bf16 %v397
    %v654 = vunpack.c.l.bf16 %v398
    %v655 = vunpack.c.l.bf16 %v399
    %v656 = vunpack.c.l.bf16 %v400
    %v657 = vunpack.c.l.bf16 %v401
    %v658 = vunpack.c.l.bf16 %v402
    %v659 = vunpack.c.l.bf16 %v403
    %v660 = vunpack.c.l.bf16 %v404
    %v661 = vunpack.c.l.bf16 %v405
    %v662 = vunpack.c.l.bf16 %v406
    %v663 = vunpack.c.l.bf16 %v407
    %v664 = vunpack.c.l.bf16 %v408
    %v665 = vunpack.c.l.bf16 %v409
    %v666 = vunpack.c.l.bf16 %v410
    %v667 = vunpack.c.l.bf16 %v411
    %v668 = vunpack.c.l.bf16 %v412
    %v669 = vunpack.c.l.bf16 %v413
    %v670 = vunpack.c.l.bf16 %v414
    %v671 = vunpack.c.l.bf16 %v415
    %v672 = vunpack.c.l.bf16 %v416
    %v673 = vunpack.c.l.bf16 %v417
    %v674 = vunpack.c.l.bf16 %v418
    %v675 = vunpack.c.l.bf16 %v419
    %v676 = vunpack.c.l.bf16 %v420
    %v677 = vunpack.c.l.bf16 %v421
    %v678 = vunpack.c.l.bf16 %v422
    %v679 = vunpack.c.l.bf16 %v423
    %v680 = vunpack.c.l.bf16 %v424
    %v681 = vunpack.c.l.bf16 %v425
    %v682 = vunpack.c.l.bf16 %v426
    %v683 = vunpack.c.l.bf16 %v427
    %v684 = vunpack.c.l.bf16 %v428
    %v685 = vunpack.c.l.bf16 %v429
    %v686 = vunpack.c.l.bf16 %v430
    %v687 = vunpack.c.l.bf16 %v431
    %v688 = vunpack.c.l.bf16 %v432
    %v689 = vunpack.c.l.bf16 %v433
    %v690 = vunpack.c.l.bf16 %v434
    %v691 = vunpack.c.l.bf16 %v435
    %v692 = vunpack.c.l.bf16 %v436
    %v693 = vunpack.c.l.bf16 %v437
    %v694 = vunpack.c.l.bf16 %v438
    %v695 = vunpack.c.l.bf16 %v439
    %v696 = vunpack.c.l.bf16 %v440
    %v697 = vunpack.c.l.bf16 %v441
    %v698 = vunpack.c.l.bf16 %v442
    %v699 = vunpack.c.l.bf16 %v443
    %v700 = vunpack.c.l.bf16 %v444
    %v701 = vunpack.c.l.bf16 %v445
    %v702 = vunpack.c.l.bf16 %v446
    %v703 = vunpack.c.l.bf16 %v447
    %v704 = vunpack.c.l.bf16 %v448
    %v705 = vunpack.c.l.bf16 %v449
    %v706 = vunpack.c.l.bf16 %v450
    %v707 = vunpack.c.l.bf16 %v451
    %v708 = vunpack.c.l.bf16 %v452
    %v709 = vunpack.c.l.bf16 %v453
    %v710 = vunpack.c.l.bf16 %v454
    %v711 = vunpack.c.l.bf16 %v455
    %v712 = vunpack.c.l.bf16 %v456
    %v713 = vunpack.c.l.bf16 %v457
    %v714 = vunpack.c.l.bf16 %v458
    %v715 = vunpack.c.l.bf16 %v459
    %v716 = vunpack.c.l.bf16 %v460
    %v717 = vunpack.c.l.bf16 %v461
    %v718 = vunpack.c.l.bf16 %v462
    %v719 = vunpack.c.l.bf16 %v463
    %v720 = vunpack.c.l.bf16 %v464
    %v721 = vunpack.c.l.bf16 %v465
    %v722 = vunpack.c.l.bf16 %v466
    %v723 = vunpack.c.l.bf16 %v467
    %v724 = vunpack.c.l.bf16 %v468
    %v725 = vunpack.c.l.bf16 %v469
    %v726 = vunpack.c.l.bf16 %v470
    %v727 = vunpack.c.l.bf16 %v471
    %v728 = vunpack.c.l.bf16 %v472
    %v729 = vunpack.c.l.bf16 %v473
    %v730 = vunpack.c.l.bf16 %v474
    %v731 = vunpack.c.l.bf16 %v475
    %v732 = vunpack.c.l.bf16 %v476
    %v733 = vunpack.c.l.bf16 %v477
    %v734 = vunpack.c.l.bf16 %v478
    %v735 = vunpack.c.l.bf16 %v479
    %v736 = vunpack.c.l.bf16 %v480
    %v737 = vunpack.c.l.bf16 %v481
    %v738 = vunpack.c.l.bf16 %v482
    %v739 = vunpack.c.l.bf16 %v483
    %v740 = vunpack.c.l.bf16 %v484
    %v741 = vunpack.c.l.bf16 %v485
    %v742 = vunpack.c.l.bf16 %v486
    %v743 = vunpack.c.l.bf16 %v487
    %v744 = vunpack.c.l.bf16 %v488
    %v745 = vunpack.c.l.bf16 %v489
    %v746 = vunpack.c.l.bf16 %v490
    %v747 = vunpack.c.l.bf16 %v491
    %v748 = vunpack.c.l.bf16 %v492
    %v749 = vunpack.c.l.bf16 %v493
    %v750 = vunpack.c.l.bf16 %v494
    %v751 = vunpack.c.l.bf16 %v495
    %v752 = vunpack.c.l.bf16 %v496
    %v753 = vunpack.c.l.bf16 %v497
    %v754 = vunpack.c.l.bf16 %v498
    %v755 = vunpack.c.l.bf16 %v499
    %v756 = vunpack.c.l.bf16 %v500
    %v757 = vunpack.c.l.bf16 %v501
    %v758 = vunpack.c.l.bf16 %v502
    %v759 = vunpack.c.l.bf16 %v503
    %v760 = vunpack.c.l.bf16 %v504
    %v761 = vunpack.c.l.bf16 %v505
    %v762 = vunpack.c.l.bf16 %v506
    %v763 = vunpack.c.l.bf16 %v507
    %v764 = vunpack.c.l.bf16 %v508
    %v765 = vunpack.c.l.bf16 %v509
    %v766 = vunpack.c.l.bf16 %v510
    %v767 = vunpack.c.l.bf16 %v511
    %v768 = vunpack.c.l.bf16 %v512
    %v769 = vunpack.c.l.bf16 %v513
    %v770 = vunpack.c.l.bf16 %v514
    %v771 = vunpack.c.l.bf16 %v515
    %v772 = vunpack.c.l.bf16 %v516
    %v773 = vunpack.c.l.bf16 %v517
    %v774 = vunpack.c.l.bf16 %v518
    %v775 = vunpack.c.l.bf16 %v519
    %v776 = vunpack.c.l.bf16 %v520
    %v777 = vunpack.c.l.bf16 %v521
    %v778 = vunpack.c.l.bf16 %v522
    %v779 = vunpack.c.l.bf16 %v523
    %v780 = vunpack.c.l.bf16 %v524
    %v781 = vunpack.c.l.bf16 %v525
    %v782 = vunpack.c.l.bf16 %v526
    %v783 = vunpack.c.l.bf16 %v527
    %v784 = vunpack.c.l.bf16 %v528
    %v785 = vunpack.c.l.bf16 %v529
    %v786 = vunpack.c.l.bf16 %v530
    %v787 = vunpack.c.l.bf16 %v531
    %v788 = vunpack.c.l.bf16 %v532
    %v789 = vunpack.c.l.bf16 %v533
    %v790 = vunpack.c.l.bf16 %v534
    %v791 = vunpack.c.l.bf16 %v535
    %v792 = vunpack.c.l.bf16 %v536
    %v793 = vunpack.c.l.bf16 %v537
    %v794 = vunpack.c.l.bf16 %v538
    %v795 = vunpack.c.l.bf16 %v539
    %v796 = vunpack.c.l.bf16 %v540
    %v797 = vunpack.c.l.bf16 %v541
    %v798 = vunpack.c.l.bf16 %v542
    %v799 = vunpack.c.l.bf16 %v543
    %v800 = vunpack.c.l.bf16 %v544
    %v801 = vunpack.c.l.bf16 %v545
    %v802 = vunpack.c.l.bf16 %v546
    %v803 = vunpack.c.l.bf16 %v547
    %v804 = vunpack.c.l.bf16 %v548
    %v805 = vunpack.c.l.bf16 %v549
    %v806 = vunpack.c.l.bf16 %v550
    %v807 = vunpack.c.l.bf16 %v551
    %v808 = vunpack.c.l.bf16 %v552
    %v809 = vunpack.c.l.bf16 %v553
    %v810 = vunpack.c.l.bf16 %v554
    %v811 = vunpack.c.l.bf16 %v555
    %v812 = vunpack.c.l.bf16 %v556
    %v813 = vunpack.c.l.bf16 %v557
    %v814 = vunpack.c.l.bf16 %v558
    %v815 = vunpack.c.l.bf16 %v559
    %v816 = vunpack.c.l.bf16 %v560
    %v817 = vunpack.c.l.bf16 %v561
    %v818 = vunpack.c.l.bf16 %v562
    %v819 = vunpack.c.l.bf16 %v563
    %v820 = vunpack.c.l.bf16 %v564
    %v821 = vunpack.c.l.bf16 %v565
    %v822 = vunpack.c.l.bf16 %v566
    %v823 = vunpack.c.l.bf16 %v567
    %v824 = vunpack.c.l.bf16 %v568
    %v825 = vunpack.c.l.bf16 %v569
    %v826 = vunpack.c.l.bf16 %v570
    %v827 = vunpack.c.l.bf16 %v571
    %v828 = vunpack.c.l.bf16 %v572
    %v829 = vunpack.c.l.bf16 %v573
    %v830 = vunpack.c.l.bf16 %v574
    %v831 = vunpack.c.l.bf16 %v575
    %v832 = vunpack.c.l.bf16 %v576
    %v833 = vunpack.c.l.bf16 %v577
    %v834 = vunpack.c.l.bf16 %v578
    %v835 = vunpack.c.l.bf16 %v579
    %v836 = vunpack.c.l.bf16 %v580
    %v837 = vunpack.c.l.bf16 %v581
    %v838 = vunpack.c.l.bf16 %v582
    %v839 = vunpack.c.l.bf16 %v583
    %v840 = vunpack.c.l.bf16 %v584
    %v841 = vunpack.c.l.bf16 %v585
    %v842 = vunpack.c.l.bf16 %v586
    %v843 = vunpack.c.l.bf16 %v587
    %v844 = vunpack.c.l.bf16 %v588
    %v845 = vunpack.c.l.bf16 %v589
    %v846 = vunpack.c.l.bf16 %v590
    %v847 = vunpack.c.l.bf16 %v591
    %v848 = vunpack.c.l.bf16 %v592
    %v849 = vunpack.c.l.bf16 %v593
    %v850 = vunpack.c.l.bf16 %v594
    %v851 = vunpack.c.l.bf16 %v595
    %v852 = vunpack.c.l.bf16 %v596
    %v853 = vunpack.c.l.bf16 %v597
    %v854 = vunpack.c.l.bf16 %v598
    %v855 = vunpack.c.l.bf16 %v599
    %v856 = vunpack.c.l.bf16 %v600
    %v857 = vunpack.c.l.bf16 %v601
    %v858 = vunpack.c.l.bf16 %v602
    %v859 = vunpack.c.l.bf16 %v603
    %v860 = vunpack.c.l.bf16 %v604
    %vm893 = vcmask 1041409
    %v894 = vsel %vm893, %v243, %v131
    %v895 = vsel %vm893, %v250, %v138
    %v896 = vsel %vm893, %v257, %v145
    %v897 = vsel %vm893, %v264, %v152
    %v898 = vsel %vm893, %v271, %v159
    %v899 = vsel %vm893, %v278, %v166
    %v900 = vsel %vm893, %v285, %v173
    %v901 = vsel %vm893, %v292, %v180
    %v902 = vsel %vm893, %v299, %v187
    %v903 = vsel %vm893, %v306, %v194
    %v904 = vsel %vm893, %v313, %v201
    %v905 = vsel %vm893, %v320, %v208
    %v906 = vsel %vm893, %v327, %v215
    %v907 = vsel %vm893, %v334, %v222
    %v908 = vsel %vm893, %v341, %v229
    %v909 = vsel %vm893, %v348, %v236
    %926 = vmatprep.subr.mxu0 0.0
    %927 = vmatpush1.msra.mxu0 %v605
    %928 = vmatprep.subr.mxu0 0.0
    %929 = vmatpush1.msra.mxu0 %v606
    %930 = vmatprep.subr.mxu0 0.0
    %931 = vmatpush1.msra.mxu0 %v607
    %932 = vmatprep.subr.mxu0 0.0
    %933 = vmatpush1.msra.mxu0 %v608
    %934 = vmatprep.subr.mxu0 0.0
    %935 = vmatpush1.msra.mxu0 %v609
    %936 = vmatprep.subr.mxu0 0.0
    %937 = vmatpush1.msra.mxu0 %v610
    %938 = vmatprep.subr.mxu0 0.0
    %939 = vmatpush1.msra.mxu0 %v611
    %940 = vmatprep.subr.mxu0 0.0
    %941 = vmatpush1.msra.mxu0 %v612
    %942 = vmatprep.subr.mxu0 0.0
    %943 = vmatpush1.msra.mxu0 %v613
    %944 = vmatprep.subr.mxu0 0.0
    %945 = vmatpush1.msra.mxu0 %v614
    %946 = vmatprep.subr.mxu0 0.0
    %947 = vmatpush1.msra.mxu0 %v615
    %948 = vmatprep.subr.mxu0 0.0
    %949 = vmatpush1.msra.mxu0 %v616
    %950 = vmatprep.subr.mxu0 0.0
    %951 = vmatpush1.msra.mxu0 %v617
    %952 = vmatprep.subr.mxu0 0.0
    %953 = vmatpush1.msra.mxu0 %v618
    %954 = vmatprep.subr.mxu0 0.0
    %955 = vmatpush1.msra.mxu0 %v619
    %956 = vmatprep.subr.mxu0 0.0
    %957 = vmatpush1.msra.mxu0 %v620
    %958 = vmatprep.subr.mxu0 0.0
    %959 = vmatpush1.msra.mxu0 %v621
    %960 = vmatprep.subr.mxu0 0.0
    %961 = vmatpush1.msra.mxu0 %v622
    %962 = vmatprep.subr.mxu0 0.0
    %963 = vmatpush1.msra.mxu0 %v623
    %964 = vmatprep.subr.mxu0 0.0
    %965 = vmatpush1.msra.mxu0 %v624
    %966 = vmatprep.subr.mxu0 0.0
    %967 = vmatpush1.msra.mxu0 %v625
    %968 = vmatprep.subr.mxu0 0.0
    %969 = vmatpush1.msra.mxu0 %v626
    %970 = vmatprep.subr.mxu0 0.0
    %971 = vmatpush1.msra.mxu0 %v627
    %972 = vmatprep.subr.mxu0 0.0
    %973 = vmatpush1.msra.mxu0 %v628
    %974 = vmatprep.subr.mxu0 0.0
    %975 = vmatpush1.msra.mxu0 %v629
    %976 = vmatprep.subr.mxu0 0.0
    %977 = vmatpush1.msra.mxu0 %v630
    %978 = vmatprep.subr.mxu0 0.0
    %979 = vmatpush1.msra.mxu0 %v631
    %980 = vmatprep.subr.mxu0 0.0
    %981 = vmatpush1.msra.mxu0 %v632
    %982 = vmatprep.subr.mxu0 0.0
    %983 = vmatpush1.msra.mxu0 %v633
    %984 = vmatprep.subr.mxu0 0.0
    %985 = vmatpush1.msra.mxu0 %v634
    %986 = vmatprep.subr.mxu0 0.0
    %987 = vmatpush1.msra.mxu0 %v635
    %988 = vmatprep.subr.mxu0 0.0
    %989 = vmatpush1.msra.mxu0 %v636
    %990 = vmatprep.mubr.f32.mxu0 %v895
    %991 = vmatmul.mubr.f32.gmra.mrb[0].mxu0 %v894
    %v992 = vpop.f32.mrb[0].mxu0
    %v993 = vadd.f32 0.0, %v992
    %v994 = vpop.f32.mrb[0].mxu0
    %995 = vdwg.mxu0
    %996 = vmatprep.subr.mxu0 0.0
    %997 = vmatpush1.msra.mxu0 %v637
    %998 = vmatprep.subr.mxu0 0.0
    %999 = vmatpush1.msra.mxu0 %v638
    %1000 = vmatprep.subr.mxu0 0.0
    %1001 = vmatpush1.msra.mxu0 %v639
    %1002 = vmatprep.subr.mxu0 0.0
    %1003 = vmatpush1.msra.mxu0 %v640
    %1004 = vmatprep.subr.mxu0 0.0
    %1005 = vmatpush1.msra.mxu0 %v641
    %1006 = vmatprep.subr.mxu0 0.0
    %1007 = vmatpush1.msra.mxu0 %v642
    %1008 = vmatprep.subr.mxu0 0.0
    %1009 = vmatpush1.msra.mxu0 %v643
    %1010 = vmatprep.subr.mxu0 0.0
    %1011 = vmatpush1.msra.mxu0 %v644
    %1012 = vmatprep.subr.mxu0 0.0
    %1013 = vmatpush1.msra.mxu0 %v645
    %1014 = vmatprep.subr.mxu0 0.0
    %1015 = vmatpush1.msra.mxu0 %v646
    %1016 = vmatprep.subr.mxu0 0.0
    %1017 = vmatpush1.msra.mxu0 %v647
    %1018 = vmatprep.subr.mxu0 0.0
    %1019 = vmatpush1.msra.mxu0 %v648
    %1020 = vmatprep.subr.mxu0 0.0
    %1021 = vmatpush1.msra.mxu0 %v649
    %1022 = vmatprep.subr.mxu0 0.0
    %1023 = vmatpush1.msra.mxu0 %v650
    %1024 = vmatprep.subr.mxu0 0.0
    %1025 = vmatpush1.msra.mxu0 %v651
    %1026 = vmatprep.subr.mxu0 0.0
    %1027 = vmatpush1.msra.mxu0 %v652
    %1028 = vmatprep.subr.mxu0 0.0
    %1029 = vmatpush1.msra.mxu0 %v653
    %1030 = vmatprep.subr.mxu0 0.0
    %1031 = vmatpush1.msra.mxu0 %v654
    %1032 = vmatprep.subr.mxu0 0.0
    %1033 = vmatpush1.msra.mxu0 %v655
    %1034 = vmatprep.subr.mxu0 0.0
    %1035 = vmatpush1.msra.mxu0 %v656
    %1036 = vmatprep.subr.mxu0 0.0
    %1037 = vmatpush1.msra.mxu0 %v657
    %1038 = vmatprep.subr.mxu0 0.0
    %1039 = vmatpush1.msra.mxu0 %v658
    %1040 = vmatprep.subr.mxu0 0.0
    %1041 = vmatpush1.msra.mxu0 %v659
    %1042 = vmatprep.subr.mxu0 0.0
    %1043 = vmatpush1.msra.mxu0 %v660
    %1044 = vmatprep.subr.mxu0 0.0
    %1045 = vmatpush1.msra.mxu0 %v661
    %1046 = vmatprep.subr.mxu0 0.0
    %1047 = vmatpush1.msra.mxu0 %v662
    %1048 = vmatprep.subr.mxu0 0.0
    %1049 = vmatpush1.msra.mxu0 %v663
    %1050 = vmatprep.subr.mxu0 0.0
    %1051 = vmatpush1.msra.mxu0 %v664
    %1052 = vmatprep.subr.mxu0 0.0
    %1053 = vmatpush1.msra.mxu0 %v665
    %1054 = vmatprep.subr.mxu0 0.0
    %1055 = vmatpush1.msra.mxu0 %v666
    %1056 = vmatprep.subr.mxu0 0.0
    %1057 = vmatpush1.msra.mxu0 %v667
    %1058 = vmatprep.subr.mxu0 0.0
    %1059 = vmatpush1.msra.mxu0 %v668
    %1060 = vmatprep.mubr.f32.mxu0 %v897
    %1061 = vmatmul.mubr.f32.gmra.mrb[0].mxu0 %v896
    %v1062 = vpop.f32.mrb[0].mxu0
    %v1063 = vadd.f32 %v993, %v1062
    %v1064 = vpop.f32.mrb[0].mxu0
    %1065 = vdwg.mxu0
    %1066 = vmatprep.subr.mxu0 0.0
    %1067 = vmatpush1.msra.mxu0 %v669
    %1068 = vmatprep.subr.mxu0 0.0
    %1069 = vmatpush1.msra.mxu0 %v670
    %1070 = vmatprep.subr.mxu0 0.0
    %1071 = vmatpush1.msra.mxu0 %v671
    %1072 = vmatprep.subr.mxu0 0.0
    %1073 = vmatpush1.msra.mxu0 %v672
    %1074 = vmatprep.subr.mxu0 0.0
    %1075 = vmatpush1.msra.mxu0 %v673
    %1076 = vmatprep.subr.mxu0 0.0
    %1077 = vmatpush1.msra.mxu0 %v674
    %1078 = vmatprep.subr.mxu0 0.0
    %1079 = vmatpush1.msra.mxu0 %v675
    %1080 = vmatprep.subr.mxu0 0.0
    %1081 = vmatpush1.msra.mxu0 %v676
    %1082 = vmatprep.subr.mxu0 0.0
    %1083 = vmatpush1.msra.mxu0 %v677
    %1084 = vmatprep.subr.mxu0 0.0
    %1085 = vmatpush1.msra.mxu0 %v678
    %1086 = vmatprep.subr.mxu0 0.0
    %1087 = vmatpush1.msra.mxu0 %v679
    %1088 = vmatprep.subr.mxu0 0.0
    %1089 = vmatpush1.msra.mxu0 %v680
    %1090 = vmatprep.subr.mxu0 0.0
    %1091 = vmatpush1.msra.mxu0 %v681
    %1092 = vmatprep.subr.mxu0 0.0
    %1093 = vmatpush1.msra.mxu0 %v682
    %1094 = vmatprep.subr.mxu0 0.0
    %1095 = vmatpush1.msra.mxu0 %v683
    %1096 = vmatprep.subr.mxu0 0.0
    %1097 = vmatpush1.msra.mxu0 %v684
    %1098 = vmatprep.subr.mxu0 0.0
    %1099 = vmatpush1.msra.mxu0 %v685
    %1100 = vmatprep.subr.mxu0 0.0
    %1101 = vmatpush1.msra.mxu0 %v686
    %1102 = vmatprep.subr.mxu0 0.0
    %1103 = vmatpush1.msra.mxu0 %v687
    %1104 = vmatprep.subr.mxu0 0.0
    %1105 = vmatpush1.msra.mxu0 %v688
    %1106 = vmatprep.subr.mxu0 0.0
    %1107 = vmatpush1.msra.mxu0 %v689
    %1108 = vmatprep.subr.mxu0 0.0
    %1109 = vmatpush1.msra.mxu0 %v690
    %1110 = vmatprep.subr.mxu0 0.0
    %1111 = vmatpush1.msra.mxu0 %v691
    %1112 = vmatprep.subr.mxu0 0.0
    %1113 = vmatpush1.msra.mxu0 %v692
    %1114 = vmatprep.subr.mxu0 0.0
    %1115 = vmatpush1.msra.mxu0 %v693
    %1116 = vmatprep.subr.mxu0 0.0
    %1117 = vmatpush1.msra.mxu0 %v694
    %1118 = vmatprep.subr.mxu0 0.0
    %1119 = vmatpush1.msra.mxu0 %v695
    %1120 = vmatprep.subr.mxu0 0.0
    %1121 = vmatpush1.msra.mxu0 %v696
    %1122 = vmatprep.subr.mxu0 0.0
    %1123 = vmatpush1.msra.mxu0 %v697
    %1124 = vmatprep.subr.mxu0 0.0
    %1125 = vmatpush1.msra.mxu0 %v698
    %1126 = vmatprep.subr.mxu0 0.0
    %1127 = vmatpush1.msra.mxu0 %v699
    %1128 = vmatprep.subr.mxu0 0.0
    %1129 = vmatpush1.msra.mxu0 %v700
    %1130 = vmatprep.mubr.f32.mxu0 %v899
    %1131 = vmatmul.mubr.f32.gmra.mrb[0].mxu0 %v898
    %v1132 = vpop.f32.mrb[0].mxu0
    %v1133 = vadd.f32 %v1063, %v1132
    %v1134 = vpop.f32.mrb[0].mxu0
    %1135 = vdwg.mxu0
    %1136 = vmatprep.subr.mxu0 0.0
    %1137 = vmatpush1.msra.mxu0 %v701
    %1138 = vmatprep.subr.mxu0 0.0
    %1139 = vmatpush1.msra.mxu0 %v702
    %1140 = vmatprep.subr.mxu0 0.0
    %1141 = vmatpush1.msra.mxu0 %v703
    %1142 = vmatprep.subr.mxu0 0.0
    %1143 = vmatpush1.msra.mxu0 %v704
    %1144 = vmatprep.subr.mxu0 0.0
    %1145 = vmatpush1.msra.mxu0 %v705
    %1146 = vmatprep.subr.mxu0 0.0
    %1147 = vmatpush1.msra.mxu0 %v706
    %1148 = vmatprep.subr.mxu0 0.0
    %1149 = vmatpush1.msra.mxu0 %v707
    %1150 = vmatprep.subr.mxu0 0.0
    %1151 = vmatpush1.msra.mxu0 %v708
    %1152 = vmatprep.subr.mxu0 0.0
    %1153 = vmatpush1.msra.mxu0 %v709
    %1154 = vmatprep.subr.mxu0 0.0
    %1155 = vmatpush1.msra.mxu0 %v710
    %1156 = vmatprep.subr.mxu0 0.0
    %1157 = vmatpush1.msra.mxu0 %v711
    %1158 = vmatprep.subr.mxu0 0.0
    %1159 = vmatpush1.msra.mxu0 %v712
    %1160 = vmatprep.subr.mxu0 0.0
    %1161 = vmatpush1.msra.mxu0 %v713
    %1162 = vmatprep.subr.mxu0 0.0
    %1163 = vmatpush1.msra.mxu0 %v714
    %1164 = vmatprep.subr.mxu0 0.0
    %1165 = vmatpush1.msra.mxu0 %v715
    %1166 = vmatprep.subr.mxu0 0.0
    %1167 = vmatpush1.msra.mxu0 %v716
    %1168 = vmatprep.subr.mxu0 0.0
    %1169 = vmatpush1.msra.mxu0 %v717
    %1170 = vmatprep.subr.mxu0 0.0
    %1171 = vmatpush1.msra.mxu0 %v718
    %1172 = vmatprep.subr.mxu0 0.0
    %1173 = vmatpush1.msra.mxu0 %v719
    %1174 = vmatprep.subr.mxu0 0.0
    %1175 = vmatpush1.msra.mxu0 %v720
    %1176 = vmatprep.subr.mxu0 0.0
    %1177 = vmatpush1.msra.mxu0 %v721
    %1178 = vmatprep.subr.mxu0 0.0
    %1179 = vmatpush1.msra.mxu0 %v722
    %1180 = vmatprep.subr.mxu0 0.0
    %1181 = vmatpush1.msra.mxu0 %v723
    %1182 = vmatprep.subr.mxu0 0.0
    %1183 = vmatpush1.msra.mxu0 %v724
    %1184 = vmatprep.subr.mxu0 0.0
    %1185 = vmatpush1.msra.mxu0 %v725
    %1186 = vmatprep.subr.mxu0 0.0
    %1187 = vmatpush1.msra.mxu0 %v726
    %1188 = vmatprep.subr.mxu0 0.0
    %1189 = vmatpush1.msra.mxu0 %v727
    %1190 = vmatprep.subr.mxu0 0.0
    %1191 = vmatpush1.msra.mxu0 %v728
    %1192 = vmatprep.subr.mxu0 0.0
    %1193 = vmatpush1.msra.mxu0 %v729
    %1194 = vmatprep.subr.mxu0 0.0
    %1195 = vmatpush1.msra.mxu0 %v730
    %1196 = vmatprep.subr.mxu0 0.0
    %1197 = vmatpush1.msra.mxu0 %v731
    %1198 = vmatprep.subr.mxu0 0.0
    %1199 = vmatpush1.msra.mxu0 %v732
    %1200 = vmatprep.mubr.f32.mxu0 %v901
    %1201 = vmatmul.mubr.f32.gmra.mrb[0].mxu0 %v900
    %v1202 = vpop.f32.mrb[0].mxu0
    %v1203 = vadd.f32 %v1133, %v1202
    %v1204 = vpop.f32.mrb[0].mxu0
    %1205 = vdwg.mxu0
    %1206 = vmatprep.subr.mxu0 0.0
    %1207 = vmatpush1.msra.mxu0 %v733
    %1208 = vmatprep.subr.mxu0 0.0
    %1209 = vmatpush1.msra.mxu0 %v734
    %1210 = vmatprep.subr.mxu0 0.0
    %1211 = vmatpush1.msra.mxu0 %v735
    %1212 = vmatprep.subr.mxu0 0.0
    %1213 = vmatpush1.msra.mxu0 %v736
    %1214 = vmatprep.subr.mxu0 0.0
    %1215 = vmatpush1.msra.mxu0 %v737
    %1216 = vmatprep.subr.mxu0 0.0
    %1217 = vmatpush1.msra.mxu0 %v738
    %1218 = vmatprep.subr.mxu0 0.0
    %1219 = vmatpush1.msra.mxu0 %v739
    %1220 = vmatprep.subr.mxu0 0.0
    %1221 = vmatpush1.msra.mxu0 %v740
    %1222 = vmatprep.subr.mxu0 0.0
    %1223 = vmatpush1.msra.mxu0 %v741
    %1224 = vmatprep.subr.mxu0 0.0
    %1225 = vmatpush1.msra.mxu0 %v742
    %1226 = vmatprep.subr.mxu0 0.0
    %1227 = vmatpush1.msra.mxu0 %v743
    %1228 = vmatprep.subr.mxu0 0.0
    %1229 = vmatpush1.msra.mxu0 %v744
    %1230 = vmatprep.subr.mxu0 0.0
    %1231 = vmatpush1.msra.mxu0 %v745
    %1232 = vmatprep.subr.mxu0 0.0
    %1233 = vmatpush1.msra.mxu0 %v746
    %1234 = vmatprep.subr.mxu0 0.0
    %1235 = vmatpush1.msra.mxu0 %v747
    %1236 = vmatprep.subr.mxu0 0.0
    %1237 = vmatpush1.msra.mxu0 %v748
    %1238 = vmatprep.subr.mxu0 0.0
    %1239 = vmatpush1.msra.mxu0 %v749
    %1240 = vmatprep.subr.mxu0 0.0
    %1241 = vmatpush1.msra.mxu0 %v750
    %1242 = vmatprep.subr.mxu0 0.0
    %1243 = vmatpush1.msra.mxu0 %v751
    %1244 = vmatprep.subr.mxu0 0.0
    %1245 = vmatpush1.msra.mxu0 %v752
    %1246 = vmatprep.subr.mxu0 0.0
    %1247 = vmatpush1.msra.mxu0 %v753
    %1248 = vmatprep.subr.mxu0 0.0
    %1249 = vmatpush1.msra.mxu0 %v754
    %1250 = vmatprep.subr.mxu0 0.0
    %1251 = vmatpush1.msra.mxu0 %v755
    %1252 = vmatprep.subr.mxu0 0.0
    %1253 = vmatpush1.msra.mxu0 %v756
    %1254 = vmatprep.subr.mxu0 0.0
    %1255 = vmatpush1.msra.mxu0 %v757
    %1256 = vmatprep.subr.mxu0 0.0
    %1257 = vmatpush1.msra.mxu0 %v758
    %1258 = vmatprep.subr.mxu0 0.0
    %1259 = vmatpush1.msra.mxu0 %v759
    %1260 = vmatprep.subr.mxu0 0.0
    %1261 = vmatpush1.msra.mxu0 %v760
    %1262 = vmatprep.subr.mxu0 0.0
    %1263 = vmatpush1.msra.mxu0 %v761
    %1264 = vmatprep.subr.mxu0 0.0
    %1265 = vmatpush1.msra.mxu0 %v762
    %1266 = vmatprep.subr.mxu0 0.0
    %1267 = vmatpush1.msra.mxu0 %v763
    %1268 = vmatprep.subr.mxu0 0.0
    %1269 = vmatpush1.msra.mxu0 %v764
    %1270 = vmatprep.mubr.f32.mxu0 %v903
    %1271 = vmatmul.mubr.f32.gmra.mrb[0].mxu0 %v902
    %v1272 = vpop.f32.mrb[0].mxu0
    %v1273 = vadd.f32 %v1203, %v1272
    %v1274 = vpop.f32.mrb[0].mxu0
    %1275 = vdwg.mxu0
    %1276 = vmatprep.subr.mxu0 0.0
    %1277 = vmatpush1.msra.mxu0 %v765
    %1278 = vmatprep.subr.mxu0 0.0
    %1279 = vmatpush1.msra.mxu0 %v766
    %1280 = vmatprep.subr.mxu0 0.0
    %1281 = vmatpush1.msra.mxu0 %v767
    %1282 = vmatprep.subr.mxu0 0.0
    %1283 = vmatpush1.msra.mxu0 %v768
    %1284 = vmatprep.subr.mxu0 0.0
    %1285 = vmatpush1.msra.mxu0 %v769
    %1286 = vmatprep.subr.mxu0 0.0
    %1287 = vmatpush1.msra.mxu0 %v770
    %1288 = vmatprep.subr.mxu0 0.0
    %1289 = vmatpush1.msra.mxu0 %v771
    %1290 = vmatprep.subr.mxu0 0.0
    %1291 = vmatpush1.msra.mxu0 %v772
    %1292 = vmatprep.subr.mxu0 0.0
    %1293 = vmatpush1.msra.mxu0 %v773
    %1294 = vmatprep.subr.mxu0 0.0
    %1295 = vmatpush1.msra.mxu0 %v774
    %1296 = vmatprep.subr.mxu0 0.0
    %1297 = vmatpush1.msra.mxu0 %v775
    %1298 = vmatprep.subr.mxu0 0.0
    %1299 = vmatpush1.msra.mxu0 %v776
    %1300 = vmatprep.subr.mxu0 0.0
    %1301 = vmatpush1.msra.mxu0 %v777
    %1302 = vmatprep.subr.mxu0 0.0
    %1303 = vmatpush1.msra.mxu0 %v778
    %1304 = vmatprep.subr.mxu0 0.0
    %1305 = vmatpush1.msra.mxu0 %v779
    %1306 = vmatprep.subr.mxu0 0.0
    %1307 = vmatpush1.msra.mxu0 %v780
    %1308 = vmatprep.subr.mxu0 0.0
    %1309 = vmatpush1.msra.mxu0 %v781
    %1310 = vmatprep.subr.mxu0 0.0
    %1311 = vmatpush1.msra.mxu0 %v782
    %1312 = vmatprep.subr.mxu0 0.0
    %1313 = vmatpush1.msra.mxu0 %v783
    %1314 = vmatprep.subr.mxu0 0.0
    %1315 = vmatpush1.msra.mxu0 %v784
    %1316 = vmatprep.subr.mxu0 0.0
    %1317 = vmatpush1.msra.mxu0 %v785
    %1318 = vmatprep.subr.mxu0 0.0
    %1319 = vmatpush1.msra.mxu0 %v786
    %1320 = vmatprep.subr.mxu0 0.0
    %1321 = vmatpush1.msra.mxu0 %v787
    %1322 = vmatprep.subr.mxu0 0.0
    %1323 = vmatpush1.msra.mxu0 %v788
    %1324 = vmatprep.subr.mxu0 0.0
    %1325 = vmatpush1.msra.mxu0 %v789
    %1326 = vmatprep.subr.mxu0 0.0
    %1327 = vmatpush1.msra.mxu0 %v790
    %1328 = vmatprep.subr.mxu0 0.0
    %1329 = vmatpush1.msra.mxu0 %v791
    %1330 = vmatprep.subr.mxu0 0.0
    %1331 = vmatpush1.msra.mxu0 %v792
    %1332 = vmatprep.subr.mxu0 0.0
    %1333 = vmatpush1.msra.mxu0 %v793
    %1334 = vmatprep.subr.mxu0 0.0
    %1335 = vmatpush1.msra.mxu0 %v794
    %1336 = vmatprep.subr.mxu0 0.0
    %1337 = vmatpush1.msra.mxu0 %v795
    %1338 = vmatprep.subr.mxu0 0.0
    %1339 = vmatpush1.msra.mxu0 %v796
    %1340 = vmatprep.mubr.f32.mxu0 %v905
    %1341 = vmatmul.mubr.f32.gmra.mrb[0].mxu0 %v904
    %v1342 = vpop.f32.mrb[0].mxu0
    %v1343 = vadd.f32 %v1273, %v1342
    %v1344 = vpop.f32.mrb[0].mxu0
    %1345 = vdwg.mxu0
    %1346 = vmatprep.subr.mxu0 0.0
    %1347 = vmatpush1.msra.mxu0 %v797
    %1348 = vmatprep.subr.mxu0 0.0
    %1349 = vmatpush1.msra.mxu0 %v798
    %1350 = vmatprep.subr.mxu0 0.0
    %1351 = vmatpush1.msra.mxu0 %v799
    %1352 = vmatprep.subr.mxu0 0.0
    %1353 = vmatpush1.msra.mxu0 %v800
    %1354 = vmatprep.subr.mxu0 0.0
    %1355 = vmatpush1.msra.mxu0 %v801
    %1356 = vmatprep.subr.mxu0 0.0
    %1357 = vmatpush1.msra.mxu0 %v802
    %1358 = vmatprep.subr.mxu0 0.0
    %1359 = vmatpush1.msra.mxu0 %v803
    %1360 = vmatprep.subr.mxu0 0.0
    %1361 = vmatpush1.msra.mxu0 %v804
    %1362 = vmatprep.subr.mxu0 0.0
    %1363 = vmatpush1.msra.mxu0 %v805
    %1364 = vmatprep.subr.mxu0 0.0
    %1365 = vmatpush1.msra.mxu0 %v806
    %1366 = vmatprep.subr.mxu0 0.0
    %1367 = vmatpush1.msra.mxu0 %v807
    %1368 = vmatprep.subr.mxu0 0.0
    %1369 = vmatpush1.msra.mxu0 %v808
    %1370 = vmatprep.subr.mxu0 0.0
    %1371 = vmatpush1.msra.mxu0 %v809
    %1372 = vmatprep.subr.mxu0 0.0
    %1373 = vmatpush1.msra.mxu0 %v810
    %1374 = vmatprep.subr.mxu0 0.0
    %1375 = vmatpush1.msra.mxu0 %v811
    %1376 = vmatprep.subr.mxu0 0.0
    %1377 = vmatpush1.msra.mxu0 %v812
    %1378 = vmatprep.subr.mxu0 0.0
    %1379 = vmatpush1.msra.mxu0 %v813
    %1380 = vmatprep.subr.mxu0 0.0
    %1381 = vmatpush1.msra.mxu0 %v814
    %1382 = vmatprep.subr.mxu0 0.0
    %1383 = vmatpush1.msra.mxu0 %v815
    %1384 = vmatprep.subr.mxu0 0.0
    %1385 = vmatpush1.msra.mxu0 %v816
    %1386 = vmatprep.subr.mxu0 0.0
    %1387 = vmatpush1.msra.mxu0 %v817
    %1388 = vmatprep.subr.mxu0 0.0
    %1389 = vmatpush1.msra.mxu0 %v818
    %1390 = vmatprep.subr.mxu0 0.0
    %1391 = vmatpush1.msra.mxu0 %v819
    %1392 = vmatprep.subr.mxu0 0.0
    %1393 = vmatpush1.msra.mxu0 %v820
    %1394 = vmatprep.subr.mxu0 0.0
    %1395 = vmatpush1.msra.mxu0 %v821
    %1396 = vmatprep.subr.mxu0 0.0
    %1397 = vmatpush1.msra.mxu0 %v822
    %1398 = vmatprep.subr.mxu0 0.0
    %1399 = vmatpush1.msra.mxu0 %v823
    %1400 = vmatprep.subr.mxu0 0.0
    %1401 = vmatpush1.msra.mxu0 %v824
    %1402 = vmatprep.subr.mxu0 0.0
    %1403 = vmatpush1.msra.mxu0 %v825
    %1404 = vmatprep.subr.mxu0 0.0
    %1405 = vmatpush1.msra.mxu0 %v826
    %1406 = vmatprep.subr.mxu0 0.0
    %1407 = vmatpush1.msra.mxu0 %v827
    %1408 = vmatprep.subr.mxu0 0.0
    %1409 = vmatpush1.msra.mxu0 %v828
    %1410 = vmatprep.mubr.f32.mxu0 %v907
    %1411 = vmatmul.mubr.f32.gmra.mrb[0].mxu0 %v906
    %v1412 = vpop.f32.mrb[0].mxu0
    %v1413 = vadd.f32 %v1343, %v1412
    %v1414 = vpop.f32.mrb[0].mxu0
    %1415 = vdwg.mxu0
    %1416 = vmatprep.subr.mxu0 0.0
    %1417 = vmatpush1.msra.mxu0 %v829
    %1418 = vmatprep.subr.mxu0 0.0
    %1419 = vmatpush1.msra.mxu0 %v830
    %1420 = vmatprep.subr.mxu0 0.0
    %1421 = vmatpush1.msra.mxu0 %v831
    %1422 = vmatprep.subr.mxu0 0.0
    %1423 = vmatpush1.msra.mxu0 %v832
    %1424 = vmatprep.subr.mxu0 0.0
    %1425 = vmatpush1.msra.mxu0 %v833
    %1426 = vmatprep.subr.mxu0 0.0
    %1427 = vmatpush1.msra.mxu0 %v834
    %1428 = vmatprep.subr.mxu0 0.0
    %1429 = vmatpush1.msra.mxu0 %v835
    %1430 = vmatprep.subr.mxu0 0.0
    %1431 = vmatpush1.msra.mxu0 %v836
    %1432 = vmatprep.subr.mxu0 0.0
    %1433 = vmatpush1.msra.mxu0 %v837
    %1434 = vmatprep.subr.mxu0 0.0
    %1435 = vmatpush1.msra.mxu0 %v838
    %1436 = vmatprep.subr.mxu0 0.0
    %1437 = vmatpush1.msra.mxu0 %v839
    %1438 = vmatprep.subr.mxu0 0.0
    %1439 = vmatpush1.msra.mxu0 %v840
    %1440 = vmatprep.subr.mxu0 0.0
    %1441 = vmatpush1.msra.mxu0 %v841
    %1442 = vmatprep.subr.mxu0 0.0
    %1443 = vmatpush1.msra.mxu0 %v842
    %1444 = vmatprep.subr.mxu0 0.0
    %1445 = vmatpush1.msra.mxu0 %v843
    %1446 = vmatprep.subr.mxu0 0.0
    %1447 = vmatpush1.msra.mxu0 %v844
    %1448 = vmatprep.subr.mxu0 0.0
    %1449 = vmatpush1.msra.mxu0 %v845
    %1450 = vmatprep.subr.mxu0 0.0
    %1451 = vmatpush1.msra.mxu0 %v846
    %1452 = vmatprep.subr.mxu0 0.0
    %1453 = vmatpush1.msra.mxu0 %v847
    %1454 = vmatprep.subr.mxu0 0.0
    %1455 = vmatpush1.msra.mxu0 %v848
    %1456 = vmatprep.subr.mxu0 0.0
    %1457 = vmatpush1.msra.mxu0 %v849
    %1458 = vmatprep.subr.mxu0 0.0
    %1459 = vmatpush1.msra.mxu0 %v850
    %1460 = vmatprep.subr.mxu0 0.0
    %1461 = vmatpush1.msra.mxu0 %v851
    %1462 = vmatprep.subr.mxu0 0.0
    %1463 = vmatpush1.msra.mxu0 %v852
    %1464 = vmatprep.subr.mxu0 0.0
    %1465 = vmatpush1.msra.mxu0 %v853
    %1466 = vmatprep.subr.mxu0 0.0
    %1467 = vmatpush1.msra.mxu0 %v854
    %1468 = vmatprep.subr.mxu0 0.0
    %1469 = vmatpush1.msra.mxu0 %v855
    %1470 = vmatprep.subr.mxu0 0.0
    %1471 = vmatpush1.msra.mxu0 %v856
    %1472 = vmatprep.subr.mxu0 0.0
    %1473 = vmatpush1.msra.mxu0 %v857
    %1474 = vmatprep.subr.mxu0 0.0
    %1475 = vmatpush1.msra.mxu0 %v858
    %1476 = vmatprep.subr.mxu0 0.0
    %1477 = vmatpush1.msra.mxu0 %v859
    %1478 = vmatprep.subr.mxu0 0.0
    %1479 = vmatpush1.msra.mxu0 %v860
    %1480 = vmatprep.mubr.f32.mxu0 %v909
    %1481 = vmatmul.mubr.f32.gmra.mrb[0].mxu0 %v908
    %v1482 = vpop.f32.mrb[0].mxu0
    %v1483 = vadd.f32 %v1413, %v1482
    %v1484 = vpop.f32.mrb[0].mxu0
    %1485 = vdwg.mxu0
    %v1486 = vmul.f32 %v1483, 0.0625
    %v1487 = vld [vmem:[%s2] sm:$0x1]
    %v1489 = vlaneseq
    %v1490 = vshrl.u32 %v1489, 7
    %v1491 = vsub.s32 0, %v1490
    %v1492 = vrot.slane %v1487, %v1491
    %v1494 = vadd.f32 %v1486, %v1492
    %v1495 = vtanh.pop %v1494
    %1496 = vst [vmem:[#allocation5] sm:$0x3] %v1495
    // Predicated region
    $region18: #{baseline_head_forward.1} parent=1 // pred_check
      _
    $region19: #{baseline_head_forward.1} parent=1 // pred_check_branch
      %1498 = sbr.rel (0) target = $region21
    $region20: #{baseline_head_forward.1} parent=1 // pred_region
      %s1500 = ssub.s32 32, 32
      %1501 = vsyncadd [#allocation4], %s1500
      %s1503 = sshll.u32 [#allocation5], 4
      %s1504 = int_to_ptr.vmem [resolvable:$true] %s1503
      %1506 = dma.vmem_to_hbm [thread:$0]  %s1504, 32, %s3, [#allocation4]
    $region21: #{baseline_head_forward.1} parent=1 // pred_fallthru
      _
    // Predicated region
    $region22: #{baseline_head_forward.1} parent=1 // pred_check
      _
    $region23: #{baseline_head_forward.1} parent=1 // pred_check_branch
      %1508 = sbr.rel (0) target = $region25
    $region24: #{baseline_head_forward.1} parent=1 // pred_region
      %1509 = dma.done [#allocation4], 32
    $region25: #{baseline_head_forward.1} parent=1 // pred_fallthru
      _
    %1510 = vsyncpa [#allocation3], 1
    %1511 = vsyncpa [#allocation4], 1

</llo_original>
